<compile_context>
chip_gen: v6e
topology: v6e:2x2x1
jax: 0.10.0
libtpu: 0.0.40
codegen_flags: <defaults>
</compile_context>

<pallas_src>
import functools

import jax
import jax.numpy as jnp
import numpy as np
from jax.experimental import pallas as pl
from jax.experimental.pallas import tpu as pltpu

KSIZE = 7
PAD = 3


def _pick_channel_tile(C, P, budget_bytes=4 * 1024 * 1024):
    """Channel chunk for the x block (CT, P): the full C, or a multiple of 8 that
    divides C and keeps a single (CT, P) f32 block under `budget_bytes`."""
    if C * P * 4 <= budget_bytes:
        return C
    cap = max(1, budget_bytes // (P * 4))
    for ct in range(min(C - 1, cap), 7, -1):
        if C % ct == 0 and ct % 8 == 0:
            return ct
    return C  # full-C block is always a legal block shape; rely on vmem limit


def _shift_lanes(v, off):
    """out[:, p] = v[:, p + off], zero-filled outside [0, P).  Static offset."""
    if off == 0:
        return v
    rows, P = v.shape
    if abs(off) >= P:
        return jnp.zeros_like(v)
    fill = jnp.zeros((rows, abs(off)), v.dtype)
    if off > 0:
        return jnp.concatenate([v[:, off:], fill], axis=1)
    return jnp.concatenate([fill, v[:, :P + off]], axis=1)


def _spatial_attention_kernel(w_ref, mask_ref, x_ref, o_ref, cmax_ref, csum_ref, *,
                              img_w, c_total):
    """Grid = (batch, channel chunks); channel chunk is the inner reduction axis.

    w_ref    : SMEM f32[2*49 + 1]  BN-folded conv weights (c, ky, kx) + fused bias
    mask_ref : VMEM f32[7, P]      column-validity mask per horizontal tap
    x_ref    : VMEM f32[CT, P]     flattened input chunk (batch dim squeezed)
    o_ref    : VMEM f32[1, P]      sigmoid attention map (lane-dense)
    cmax_ref : VMEM f32[1, P]      running channel max
    csum_ref : VMEM f32[1, P]      running channel sum
    """
    cc = pl.program_id(1)
    CT, P = x_ref.shape

    @pl.when(cc == 0)
    def _init():
        cmax_ref[...] = jnp.full((1, P), -jnp.inf, dtype=jnp.float32)
        csum_ref[...] = jnp.zeros((1, P), dtype=jnp.float32)

    # Fused single-pass channel max + sum over this chunk, 8 sublanes at a time.
    cmax = cmax_ref[...]
    csum = csum_ref[...]
    for c0 in range(0, CT, 8):
        csz = min(8, CT - c0)
        blk = x_ref[pl.ds(c0, csz), :]
        cmax = jnp.maximum(cmax, jnp.max(blk, axis=0, keepdims=True))
        csum = csum + jnp.sum(blk, axis=0, keepdims=True)
    cmax_ref[...] = cmax
    csum_ref[...] = csum

    @pl.when(cc == pl.num_programs(1) - 1)
    def _finalize():
        pooled = (cmax_ref[...], csum_ref[...] * (1.0 / c_total))  # (max, mean)

        # Row (H) taps: flattened zero-filled shift by (ky - PAD) * W.  The zero
        # fill is exactly the conv's zero padding of out-of-range rows.
        rowsh = [[_shift_lanes(pm, (ky - PAD) * img_w) for ky in range(KSIZE)]
                 for pm in pooled]

        bias = w_ref[2 * KSIZE * KSIZE]
        acc = jnp.zeros((1, P), dtype=jnp.float32)
        for kx in range(KSIZE):
            d = kx - PAD
            # Fold all 14 (c, ky) taps sharing this kx before the single lane shift.
            t = jnp.zeros((1, P), dtype=jnp.float32)
            for ky in range(KSIZE):
                t = t + w_ref[ky * KSIZE + kx] * rowsh[0][ky]
                t = t + w_ref[KSIZE * KSIZE + ky * KSIZE + kx] * rowsh[1][ky]
            t = _shift_lanes(t, d)
            if d != 0:
                t = t * mask_ref[pl.ds(kx, 1), :]  # column zero padding
            acc = acc + t

        o_ref[...] = jax.nn.sigmoid(acc + bias).astype(o_ref.dtype)


def spatial_attention(x, conv_w, conv_b, bn_gamma, bn_beta, bn_mean, bn_var, eps=1e-5):
    """x: (N, C, H, W) float32.  Returns (N, 1, H, W) float32."""
    N, C, H, W = x.shape
    P = H * W

    # Fold eval-mode BatchNorm2d(1) into the conv weight / bias (1 output channel).
    s = bn_gamma[0] / jnp.sqrt(bn_var[0] + eps)
    w_fused = (conv_w[0] * s).astype(jnp.float32)                        # (2, 7, 7)
    b_fused = ((conv_b[0] - bn_mean[0]) * s + bn_beta[0]).astype(jnp.float32)
    w_flat = jnp.concatenate([w_fused.reshape(-1), b_fused.reshape(1)])  # (99,)

    x_flat = x.astype(jnp.float32).reshape(N, C, P)  # contiguous -> free reshape

    # Column-validity masks: mask[kx, p] = 1 iff 0 <= col(p) + (kx - 3) < W.
    col = np.arange(P, dtype=np.int64) % W
    col_masks = np.stack(
        [((col + (kx - PAD) >= 0) & (col + (kx - PAD) < W)).astype(np.float32)
         for kx in range(KSIZE)])
    col_masks = jnp.asarray(col_masks)                                   # (7, P)

    CT = _pick_channel_tile(C, P)
    kernel = functools.partial(_spatial_attention_kernel, img_w=W, c_total=C)

    out_flat = pl.pallas_call(
        kernel,
        out_shape=jax.ShapeDtypeStruct((N, 1, P), jnp.float32),
        grid_spec=pltpu.PrefetchScalarGridSpec(
            num_scalar_prefetch=0,
            grid=(N, C // CT),
            in_specs=[
                pl.BlockSpec(memory_space=pltpu.MemorySpace.SMEM),     # fused weights
                pl.BlockSpec((KSIZE, P), lambda n, c: (0, 0)),         # column masks
                pl.BlockSpec((None, CT, P), lambda n, c: (n, c, 0)),   # x chunk
            ],
            out_specs=pl.BlockSpec((None, 1, P), lambda n, c: (n, 0, 0)),
            scratch_shapes=[pltpu.VMEM((1, P), jnp.float32),
                            pltpu.VMEM((1, P), jnp.float32)],
        ),
        compiler_params=pltpu.CompilerParams(
            dimension_semantics=("parallel", "arbitrary"),
            vmem_limit_bytes=32 * 1024 * 1024,
        ),
    )(w_flat, col_masks, x_flat)

    return out_flat.reshape(N, 1, H, W)


def _reference(x, conv_w, conv_b, bn_gamma, bn_beta, bn_mean, bn_var, eps=1e-5):
    """Pure-JAX reference mirroring the PyTorch forward (BN in eval mode)."""
    cmax = jnp.max(x, axis=1, keepdims=True)
    cmean = jnp.mean(x, axis=1, keepdims=True)
    xc = jnp.concatenate([cmax, cmean], axis=1)                    # (N, 2, H, W)
    y = jax.lax.conv_general_dilated(
        xc, conv_w, window_strides=(1, 1), padding=[(PAD, PAD), (PAD, PAD)],
        dimension_numbers=("NCHW", "OIHW", "NCHW"))
    y = y + conv_b.reshape(1, -1, 1, 1)
    y = (y - bn_mean.reshape(1, -1, 1, 1)) / jnp.sqrt(bn_var.reshape(1, -1, 1, 1) + eps)
    y = y * bn_gamma.reshape(1, -1, 1, 1) + bn_beta.reshape(1, -1, 1, 1)
    return jax.nn.sigmoid(y)


if __name__ == "__main__":
    key = jax.random.PRNGKey(0)
    kx, kw, kb = jax.random.split(key, 3)

    N, C, H, W = 2, 4, 16, 16
    x = jax.random.normal(kx, (N, C, H, W), dtype=jnp.float32)

    # Deterministic synthetic parameters (shapes match nn.Conv2d(2,1,7) + nn.BatchNorm2d(1)).
    conv_w = 0.1 * jax.random.normal(kw, (1, 2, KSIZE, KSIZE), dtype=jnp.float32)
    conv_b = 0.05 * jax.random.normal(kb, (1,), dtype=jnp.float32)
    bn_gamma = jnp.array([1.2], dtype=jnp.float32)
    bn_beta = jnp.array([-0.1], dtype=jnp.float32)
    bn_mean = jnp.array([0.03], dtype=jnp.float32)
    bn_var = jnp.array([0.9], dtype=jnp.float32)

    out = spatial_attention(x, conv_w, conv_b, bn_gamma, bn_beta, bn_mean, bn_var)
    out = jax.block_until_ready(out)

    ref = _reference(x, conv_w, conv_b, bn_gamma, bn_beta, bn_mean, bn_var)
    np.testing.assert_allclose(np.asarray(out), np.asarray(ref), rtol=1e-5, atol=1e-5)

    print("KERNEL_OK")
</pallas_src>

<mosaic_0001>
module attributes {stable_mosaic.version = 11 : i64} {
  func.func @_spatial_attention_kernel(%arg0: i32, %arg1: i32, %arg2: memref<99xf32, #tpu.memory_space<smem>>, %arg3: memref<7x256xf32, #tpu.memory_space<vmem>>, %arg4: memref<1x4x256xf32, #tpu.memory_space<vmem>>, %arg5: memref<1x1x256xf32, #tpu.memory_space<vmem>>, %arg6: memref<1x256xf32, #tpu.memory_space<vmem>>, %arg7: memref<1x256xf32, #tpu.memory_space<vmem>>) attributes {dimension_semantics = [#tpu.dimension_semantics<parallel>, #tpu.dimension_semantics<arbitrary>], iteration_bounds = array<i64: 2, 1>, scalar_prefetch = 0 : i64, scratch_operands = 2 : i64, tpu.core_type = #tpu.core_type<tc>, window_params = [{transform_indices = @transform_0, window_bounds = array<i64: 99>}, {pipeline_mode = #tpu.pipeline_mode<synchronous>, transform_indices = @transform_1, window_bounds = array<i64: 7, 256>}, {transform_indices = @transform_2, window_bounds = array<i64: 1, 4, 256>}, {transform_indices = @transform_3, window_bounds = array<i64: 1, 1, 256>}]} {
    %c0_i32 = arith.constant 0 : i32
    %0 = arith.cmpi eq, %arg1, %c0_i32 : i32
    %1 = arith.extui %0 : i1 to i32
    %c0_i32_0 = arith.constant 0 : i32
    %2 = arith.cmpi ne, %1, %c0_i32_0 : i32
    scf.if %2 {
      %cst_14 = arith.constant 0xFF800000 : f32
      %18 = vector.broadcast %cst_14 : f32 to vector<1x256xf32>
      %c0_15 = arith.constant 0 : index
      %c0_16 = arith.constant 0 : index
      %19 = vector.load %arg6[%c0_15, %c0_16] : memref<1x256xf32, #tpu.memory_space<vmem>>, vector<1x256xf32>
      tpu.vector_store %arg6[%c0_15, %c0_16], %18 {strides = array<i32>} : memref<1x256xf32, #tpu.memory_space<vmem>>, vector<1x256xf32>,
      %cst_17 = arith.constant 0.000000e+00 : f32
      %20 = vector.broadcast %cst_17 : f32 to vector<1x256xf32>
      %c0_18 = arith.constant 0 : index
      %c0_19 = arith.constant 0 : index
      %21 = vector.load %arg7[%c0_18, %c0_19] : memref<1x256xf32, #tpu.memory_space<vmem>>, vector<1x256xf32>
      tpu.vector_store %arg7[%c0_18, %c0_19], %20 {strides = array<i32>} : memref<1x256xf32, #tpu.memory_space<vmem>>, vector<1x256xf32>,
    } else {
    }
    %c0 = arith.constant 0 : index
    %c0_1 = arith.constant 0 : index
    %3 = vector.load %arg6[%c0, %c0_1] : memref<1x256xf32, #tpu.memory_space<vmem>>, vector<1x256xf32>
    %c0_2 = arith.constant 0 : index
    %c0_3 = arith.constant 0 : index
    %4 = vector.load %arg7[%c0_2, %c0_3] : memref<1x256xf32, #tpu.memory_space<vmem>>, vector<1x256xf32>
    %c0_4 = arith.constant 0 : index
    %c0_5 = arith.constant 0 : index
    %c0_6 = arith.constant 0 : index
    %5 = vector.load %arg4[%c0_4, %c0_5, %c0_6] : memref<1x4x256xf32, #tpu.memory_space<vmem>>, vector<1x4x256xf32>
    %6 = vector.shape_cast %5 : vector<1x4x256xf32> to vector<4x256xf32>
    %cst = arith.constant dense<0xFF800000> : vector<256xf32>
    %7 = vector.multi_reduction <maximumf>, %6, %cst [0] : vector<4x256xf32> to vector<256xf32>
    %8 = vector.shape_cast %7 : vector<256xf32> to vector<1x256xf32>
    %9 = arith.maximumf %3, %8 : vector<1x256xf32>
    %cst_7 = arith.constant dense<0.000000e+00> : vector<256xf32>
    %10 = vector.multi_reduction <add>, %6, %cst_7 [0] : vector<4x256xf32> to vector<256xf32>
    %11 = vector.shape_cast %10 : vector<256xf32> to vector<1x256xf32>
    %12 = arith.addf %4, %11 : vector<1x256xf32>
    %c0_8 = arith.constant 0 : index
    %c0_9 = arith.constant 0 : index
    %13 = vector.load %arg6[%c0_8, %c0_9] : memref<1x256xf32, #tpu.memory_space<vmem>>, vector<1x256xf32>
    tpu.vector_store %arg6[%c0_8, %c0_9], %9 {strides = array<i32>} : memref<1x256xf32, #tpu.memory_space<vmem>>, vector<1x256xf32>,
    %c0_10 = arith.constant 0 : index
    %c0_11 = arith.constant 0 : index
    %14 = vector.load %arg7[%c0_10, %c0_11] : memref<1x256xf32, #tpu.memory_space<vmem>>, vector<1x256xf32>
    tpu.vector_store %arg7[%c0_10, %c0_11], %12 {strides = array<i32>} : memref<1x256xf32, #tpu.memory_space<vmem>>, vector<1x256xf32>,
    %c0_i32_12 = arith.constant 0 : i32
    %15 = arith.cmpi eq, %arg1, %c0_i32_12 : i32
    %16 = arith.extui %15 : i1 to i32
    %c0_i32_13 = arith.constant 0 : i32
    %17 = arith.cmpi ne, %16, %c0_i32_13 : i32
    scf.if %17 {
      %c0_14 = arith.constant 0 : index
      %c0_15 = arith.constant 0 : index
      %18 = vector.load %arg6[%c0_14, %c0_15] : memref<1x256xf32, #tpu.memory_space<vmem>>, vector<1x256xf32>
      %c0_16 = arith.constant 0 : index
      %c0_17 = arith.constant 0 : index
      %19 = vector.load %arg7[%c0_16, %c0_17] : memref<1x256xf32, #tpu.memory_space<vmem>>, vector<1x256xf32>
      %cst_18 = arith.constant 2.500000e-01 : f32
      %20 = vector.broadcast %cst_18 : f32 to vector<1x256xf32>
      %21 = arith.mulf %19, %20 : vector<1x256xf32>
      %cst_19 = arith.constant 0.000000e+00 : f32
      %22 = vector.broadcast %cst_19 : f32 to vector<1x48xf32>
      %23 = vector.extract_strided_slice %18 {offsets = [0, 0], sizes = [1, 208], strides = [1, 1]} : vector<1x256xf32> to vector<1x208xf32>
      %24 = tpu.concatenate %22, %23 in 1 : vector<1x48xf32>, vector<1x208xf32> -> vector<1x256xf32>
      %cst_20 = arith.constant 0.000000e+00 : f32
      %25 = vector.broadcast %cst_20 : f32 to vector<1x32xf32>
      %26 = vector.extract_strided_slice %18 {offsets = [0, 0], sizes = [1, 224], strides = [1, 1]} : vector<1x256xf32> to vector<1x224xf32>
      %27 = tpu.concatenate %25, %26 in 1 : vector<1x32xf32>, vector<1x224xf32> -> vector<1x256xf32>
      %cst_21 = arith.constant 0.000000e+00 : f32
      %28 = vector.broadcast %cst_21 : f32 to vector<1x16xf32>
      %29 = vector.extract_strided_slice %18 {offsets = [0, 0], sizes = [1, 240], strides = [1, 1]} : vector<1x256xf32> to vector<1x240xf32>
      %30 = tpu.concatenate %28, %29 in 1 : vector<1x16xf32>, vector<1x240xf32> -> vector<1x256xf32>
      %cst_22 = arith.constant 0.000000e+00 : f32
      %31 = vector.broadcast %cst_22 : f32 to vector<1x16xf32>
      %32 = vector.extract_strided_slice %18 {offsets = [0, 16], sizes = [1, 240], strides = [1, 1]} : vector<1x256xf32> to vector<1x240xf32>
      %33 = tpu.concatenate %32, %31 in 1 : vector<1x240xf32>, vector<1x16xf32> -> vector<1x256xf32>
      %cst_23 = arith.constant 0.000000e+00 : f32
      %34 = vector.broadcast %cst_23 : f32 to vector<1x32xf32>
      %35 = vector.extract_strided_slice %18 {offsets = [0, 32], sizes = [1, 224], strides = [1, 1]} : vector<1x256xf32> to vector<1x224xf32>
      %36 = tpu.concatenate %35, %34 in 1 : vector<1x224xf32>, vector<1x32xf32> -> vector<1x256xf32>
      %cst_24 = arith.constant 0.000000e+00 : f32
      %37 = vector.broadcast %cst_24 : f32 to vector<1x48xf32>
      %38 = vector.extract_strided_slice %18 {offsets = [0, 48], sizes = [1, 208], strides = [1, 1]} : vector<1x256xf32> to vector<1x208xf32>
      %39 = tpu.concatenate %38, %37 in 1 : vector<1x208xf32>, vector<1x48xf32> -> vector<1x256xf32>
      %cst_25 = arith.constant 0.000000e+00 : f32
      %40 = vector.broadcast %cst_25 : f32 to vector<1x48xf32>
      %41 = vector.extract_strided_slice %21 {offsets = [0, 0], sizes = [1, 208], strides = [1, 1]} : vector<1x256xf32> to vector<1x208xf32>
      %42 = tpu.concatenate %40, %41 in 1 : vector<1x48xf32>, vector<1x208xf32> -> vector<1x256xf32>
      %cst_26 = arith.constant 0.000000e+00 : f32
      %43 = vector.broadcast %cst_26 : f32 to vector<1x32xf32>
      %44 = vector.extract_strided_slice %21 {offsets = [0, 0], sizes = [1, 224], strides = [1, 1]} : vector<1x256xf32> to vector<1x224xf32>
      %45 = tpu.concatenate %43, %44 in 1 : vector<1x32xf32>, vector<1x224xf32> -> vector<1x256xf32>
      %cst_27 = arith.constant 0.000000e+00 : f32
      %46 = vector.broadcast %cst_27 : f32 to vector<1x16xf32>
      %47 = vector.extract_strided_slice %21 {offsets = [0, 0], sizes = [1, 240], strides = [1, 1]} : vector<1x256xf32> to vector<1x240xf32>
      %48 = tpu.concatenate %46, %47 in 1 : vector<1x16xf32>, vector<1x240xf32> -> vector<1x256xf32>
      %cst_28 = arith.constant 0.000000e+00 : f32
      %49 = vector.broadcast %cst_28 : f32 to vector<1x16xf32>
      %50 = vector.extract_strided_slice %21 {offsets = [0, 16], sizes = [1, 240], strides = [1, 1]} : vector<1x256xf32> to vector<1x240xf32>
      %51 = tpu.concatenate %50, %49 in 1 : vector<1x240xf32>, vector<1x16xf32> -> vector<1x256xf32>
      %cst_29 = arith.constant 0.000000e+00 : f32
      %52 = vector.broadcast %cst_29 : f32 to vector<1x32xf32>
      %53 = vector.extract_strided_slice %21 {offsets = [0, 32], sizes = [1, 224], strides = [1, 1]} : vector<1x256xf32> to vector<1x224xf32>
      %54 = tpu.concatenate %53, %52 in 1 : vector<1x224xf32>, vector<1x32xf32> -> vector<1x256xf32>
      %cst_30 = arith.constant 0.000000e+00 : f32
      %55 = vector.broadcast %cst_30 : f32 to vector<1x48xf32>
      %56 = vector.extract_strided_slice %21 {offsets = [0, 48], sizes = [1, 208], strides = [1, 1]} : vector<1x256xf32> to vector<1x208xf32>
      %57 = tpu.concatenate %56, %55 in 1 : vector<1x208xf32>, vector<1x48xf32> -> vector<1x256xf32>
      %c98 = arith.constant 98 : index
      %58 = memref.load %arg2[%c98] : memref<99xf32, #tpu.memory_space<smem>>
      %cst_31 = arith.constant 0.000000e+00 : f32
      %59 = vector.broadcast %cst_31 : f32 to vector<1x256xf32>
      %cst_32 = arith.constant 0.000000e+00 : f32
      %60 = vector.broadcast %cst_32 : f32 to vector<1x256xf32>
      %c0_33 = arith.constant 0 : index
      %61 = memref.load %arg2[%c0_33] : memref<99xf32, #tpu.memory_space<smem>>
      %62 = vector.broadcast %61 : f32 to vector<1x256xf32>
      %63 = arith.mulf %62, %24 : vector<1x256xf32>
      %64 = arith.addf %60, %63 : vector<1x256xf32>
      %c49 = arith.constant 49 : index
      %65 = memref.load %arg2[%c49] : memref<99xf32, #tpu.memory_space<smem>>
      %66 = vector.broadcast %65 : f32 to vector<1x256xf32>
      %67 = arith.mulf %66, %42 : vector<1x256xf32>
      %68 = arith.addf %64, %67 : vector<1x256xf32>
      %c7 = arith.constant 7 : index
      %69 = memref.load %arg2[%c7] : memref<99xf32, #tpu.memory_space<smem>>
      %70 = vector.broadcast %69 : f32 to vector<1x256xf32>
      %71 = arith.mulf %70, %27 : vector<1x256xf32>
      %72 = arith.addf %68, %71 : vector<1x256xf32>
      %c56 = arith.constant 56 : index
      %73 = memref.load %arg2[%c56] : memref<99xf32, #tpu.memory_space<smem>>
      %74 = vector.broadcast %73 : f32 to vector<1x256xf32>
      %75 = arith.mulf %74, %45 : vector<1x256xf32>
      %76 = arith.addf %72, %75 : vector<1x256xf32>
      %c14 = arith.constant 14 : index
      %77 = memref.load %arg2[%c14] : memref<99xf32, #tpu.memory_space<smem>>
      %78 = vector.broadcast %77 : f32 to vector<1x256xf32>
      %79 = arith.mulf %78, %30 : vector<1x256xf32>
      %80 = arith.addf %76, %79 : vector<1x256xf32>
      %c63 = arith.constant 63 : index
      %81 = memref.load %arg2[%c63] : memref<99xf32, #tpu.memory_space<smem>>
      %82 = vector.broadcast %81 : f32 to vector<1x256xf32>
      %83 = arith.mulf %82, %48 : vector<1x256xf32>
      %84 = arith.addf %80, %83 : vector<1x256xf32>
      %c21 = arith.constant 21 : index
      %85 = memref.load %arg2[%c21] : memref<99xf32, #tpu.memory_space<smem>>
      %86 = vector.broadcast %85 : f32 to vector<1x256xf32>
      %87 = arith.mulf %86, %18 : vector<1x256xf32>
      %88 = arith.addf %84, %87 : vector<1x256xf32>
      %c70 = arith.constant 70 : index
      %89 = memref.load %arg2[%c70] : memref<99xf32, #tpu.memory_space<smem>>
      %90 = vector.broadcast %89 : f32 to vector<1x256xf32>
      %91 = arith.mulf %90, %21 : vector<1x256xf32>
      %92 = arith.addf %88, %91 : vector<1x256xf32>
      %c28 = arith.constant 28 : index
      %93 = memref.load %arg2[%c28] : memref<99xf32, #tpu.memory_space<smem>>
      %94 = vector.broadcast %93 : f32 to vector<1x256xf32>
      %95 = arith.mulf %94, %33 : vector<1x256xf32>
      %96 = arith.addf %92, %95 : vector<1x256xf32>
      %c77 = arith.constant 77 : index
      %97 = memref.load %arg2[%c77] : memref<99xf32, #tpu.memory_space<smem>>
      %98 = vector.broadcast %97 : f32 to vector<1x256xf32>
      %99 = arith.mulf %98, %51 : vector<1x256xf32>
      %100 = arith.addf %96, %99 : vector<1x256xf32>
      %c35 = arith.constant 35 : index
      %101 = memref.load %arg2[%c35] : memref<99xf32, #tpu.memory_space<smem>>
      %102 = vector.broadcast %101 : f32 to vector<1x256xf32>
      %103 = arith.mulf %102, %36 : vector<1x256xf32>
      %104 = arith.addf %100, %103 : vector<1x256xf32>
      %c84 = arith.constant 84 : index
      %105 = memref.load %arg2[%c84] : memref<99xf32, #tpu.memory_space<smem>>
      %106 = vector.broadcast %105 : f32 to vector<1x256xf32>
      %107 = arith.mulf %106, %54 : vector<1x256xf32>
      %108 = arith.addf %104, %107 : vector<1x256xf32>
      %c42 = arith.constant 42 : index
      %109 = memref.load %arg2[%c42] : memref<99xf32, #tpu.memory_space<smem>>
      %110 = vector.broadcast %109 : f32 to vector<1x256xf32>
      %111 = arith.mulf %110, %39 : vector<1x256xf32>
      %112 = arith.addf %108, %111 : vector<1x256xf32>
      %c91 = arith.constant 91 : index
      %113 = memref.load %arg2[%c91] : memref<99xf32, #tpu.memory_space<smem>>
      %114 = vector.broadcast %113 : f32 to vector<1x256xf32>
      %115 = arith.mulf %114, %57 : vector<1x256xf32>
      %116 = arith.addf %112, %115 : vector<1x256xf32>
      %cst_34 = arith.constant 0.000000e+00 : f32
      %117 = vector.broadcast %cst_34 : f32 to vector<1x3xf32>
      %118 = vector.extract_strided_slice %116 {offsets = [0, 0], sizes = [1, 253], strides = [1, 1]} : vector<1x256xf32> to vector<1x253xf32>
      %119 = tpu.concatenate %117, %118 in 1 : vector<1x3xf32>, vector<1x253xf32> -> vector<1x256xf32>
      %c0_35 = arith.constant 0 : index
      %c0_36 = arith.constant 0 : index
      %120 = vector.load %arg3[%c0_35, %c0_36] : memref<7x256xf32, #tpu.memory_space<vmem>>, vector<1x256xf32>
      %121 = arith.mulf %119, %120 : vector<1x256xf32>
      %122 = arith.addf %59, %121 : vector<1x256xf32>
      %cst_37 = arith.constant 0.000000e+00 : f32
      %123 = vector.broadcast %cst_37 : f32 to vector<1x256xf32>
      %c1 = arith.constant 1 : index
      %124 = memref.load %arg2[%c1] : memref<99xf32, #tpu.memory_space<smem>>
      %125 = vector.broadcast %124 : f32 to vector<1x256xf32>
      %126 = arith.mulf %125, %24 : vector<1x256xf32>
      %127 = arith.addf %123, %126 : vector<1x256xf32>
      %c50 = arith.constant 50 : index
      %128 = memref.load %arg2[%c50] : memref<99xf32, #tpu.memory_space<smem>>
      %129 = vector.broadcast %128 : f32 to vector<1x256xf32>
      %130 = arith.mulf %129, %42 : vector<1x256xf32>
      %131 = arith.addf %127, %130 : vector<1x256xf32>
      %c8 = arith.constant 8 : index
      %132 = memref.load %arg2[%c8] : memref<99xf32, #tpu.memory_space<smem>>
      %133 = vector.broadcast %132 : f32 to vector<1x256xf32>
      %134 = arith.mulf %133, %27 : vector<1x256xf32>
      %135 = arith.addf %131, %134 : vector<1x256xf32>
      %c57 = arith.constant 57 : index
      %136 = memref.load %arg2[%c57] : memref<99xf32, #tpu.memory_space<smem>>
      %137 = vector.broadcast %136 : f32 to vector<1x256xf32>
      %138 = arith.mulf %137, %45 : vector<1x256xf32>
      %139 = arith.addf %135, %138 : vector<1x256xf32>
      %c15 = arith.constant 15 : index
      %140 = memref.load %arg2[%c15] : memref<99xf32, #tpu.memory_space<smem>>
      %141 = vector.broadcast %140 : f32 to vector<1x256xf32>
      %142 = arith.mulf %141, %30 : vector<1x256xf32>
      %143 = arith.addf %139, %142 : vector<1x256xf32>
      %c64 = arith.constant 64 : index
      %144 = memref.load %arg2[%c64] : memref<99xf32, #tpu.memory_space<smem>>
      %145 = vector.broadcast %144 : f32 to vector<1x256xf32>
      %146 = arith.mulf %145, %48 : vector<1x256xf32>
      %147 = arith.addf %143, %146 : vector<1x256xf32>
      %c22 = arith.constant 22 : index
      %148 = memref.load %arg2[%c22] : memref<99xf32, #tpu.memory_space<smem>>
      %149 = vector.broadcast %148 : f32 to vector<1x256xf32>
      %150 = arith.mulf %149, %18 : vector<1x256xf32>
      %151 = arith.addf %147, %150 : vector<1x256xf32>
      %c71 = arith.constant 71 : index
      %152 = memref.load %arg2[%c71] : memref<99xf32, #tpu.memory_space<smem>>
      %153 = vector.broadcast %152 : f32 to vector<1x256xf32>
      %154 = arith.mulf %153, %21 : vector<1x256xf32>
      %155 = arith.addf %151, %154 : vector<1x256xf32>
      %c29 = arith.constant 29 : index
      %156 = memref.load %arg2[%c29] : memref<99xf32, #tpu.memory_space<smem>>
      %157 = vector.broadcast %156 : f32 to vector<1x256xf32>
      %158 = arith.mulf %157, %33 : vector<1x256xf32>
      %159 = arith.addf %155, %158 : vector<1x256xf32>
      %c78 = arith.constant 78 : index
      %160 = memref.load %arg2[%c78] : memref<99xf32, #tpu.memory_space<smem>>
      %161 = vector.broadcast %160 : f32 to vector<1x256xf32>
      %162 = arith.mulf %161, %51 : vector<1x256xf32>
      %163 = arith.addf %159, %162 : vector<1x256xf32>
      %c36 = arith.constant 36 : index
      %164 = memref.load %arg2[%c36] : memref<99xf32, #tpu.memory_space<smem>>
      %165 = vector.broadcast %164 : f32 to vector<1x256xf32>
      %166 = arith.mulf %165, %36 : vector<1x256xf32>
      %167 = arith.addf %163, %166 : vector<1x256xf32>
      %c85 = arith.constant 85 : index
      %168 = memref.load %arg2[%c85] : memref<99xf32, #tpu.memory_space<smem>>
      %169 = vector.broadcast %168 : f32 to vector<1x256xf32>
      %170 = arith.mulf %169, %54 : vector<1x256xf32>
      %171 = arith.addf %167, %170 : vector<1x256xf32>
      %c43 = arith.constant 43 : index
      %172 = memref.load %arg2[%c43] : memref<99xf32, #tpu.memory_space<smem>>
      %173 = vector.broadcast %172 : f32 to vector<1x256xf32>
      %174 = arith.mulf %173, %39 : vector<1x256xf32>
      %175 = arith.addf %171, %174 : vector<1x256xf32>
      %c92 = arith.constant 92 : index
      %176 = memref.load %arg2[%c92] : memref<99xf32, #tpu.memory_space<smem>>
      %177 = vector.broadcast %176 : f32 to vector<1x256xf32>
      %178 = arith.mulf %177, %57 : vector<1x256xf32>
      %179 = arith.addf %175, %178 : vector<1x256xf32>
      %cst_38 = arith.constant 0.000000e+00 : f32
      %180 = vector.broadcast %cst_38 : f32 to vector<1x2xf32>
      %181 = vector.extract_strided_slice %179 {offsets = [0, 0], sizes = [1, 254], strides = [1, 1]} : vector<1x256xf32> to vector<1x254xf32>
      %182 = tpu.concatenate %180, %181 in 1 : vector<1x2xf32>, vector<1x254xf32> -> vector<1x256xf32>
      %c1_39 = arith.constant 1 : index
      %c0_40 = arith.constant 0 : index
      %183 = vector.load %arg3[%c1_39, %c0_40] : memref<7x256xf32, #tpu.memory_space<vmem>>, vector<1x256xf32>
      %184 = arith.mulf %182, %183 : vector<1x256xf32>
      %185 = arith.addf %122, %184 : vector<1x256xf32>
      %cst_41 = arith.constant 0.000000e+00 : f32
      %186 = vector.broadcast %cst_41 : f32 to vector<1x256xf32>
      %c2 = arith.constant 2 : index
      %187 = memref.load %arg2[%c2] : memref<99xf32, #tpu.memory_space<smem>>
      %188 = vector.broadcast %187 : f32 to vector<1x256xf32>
      %189 = arith.mulf %188, %24 : vector<1x256xf32>
      %190 = arith.addf %186, %189 : vector<1x256xf32>
      %c51 = arith.constant 51 : index
      %191 = memref.load %arg2[%c51] : memref<99xf32, #tpu.memory_space<smem>>
      %192 = vector.broadcast %191 : f32 to vector<1x256xf32>
      %193 = arith.mulf %192, %42 : vector<1x256xf32>
      %194 = arith.addf %190, %193 : vector<1x256xf32>
      %c9 = arith.constant 9 : index
      %195 = memref.load %arg2[%c9] : memref<99xf32, #tpu.memory_space<smem>>
      %196 = vector.broadcast %195 : f32 to vector<1x256xf32>
      %197 = arith.mulf %196, %27 : vector<1x256xf32>
      %198 = arith.addf %194, %197 : vector<1x256xf32>
      %c58 = arith.constant 58 : index
      %199 = memref.load %arg2[%c58] : memref<99xf32, #tpu.memory_space<smem>>
      %200 = vector.broadcast %199 : f32 to vector<1x256xf32>
      %201 = arith.mulf %200, %45 : vector<1x256xf32>
      %202 = arith.addf %198, %201 : vector<1x256xf32>
      %c16 = arith.constant 16 : index
      %203 = memref.load %arg2[%c16] : memref<99xf32, #tpu.memory_space<smem>>
      %204 = vector.broadcast %203 : f32 to vector<1x256xf32>
      %205 = arith.mulf %204, %30 : vector<1x256xf32>
      %206 = arith.addf %202, %205 : vector<1x256xf32>
      %c65 = arith.constant 65 : index
      %207 = memref.load %arg2[%c65] : memref<99xf32, #tpu.memory_space<smem>>
      %208 = vector.broadcast %207 : f32 to vector<1x256xf32>
      %209 = arith.mulf %208, %48 : vector<1x256xf32>
      %210 = arith.addf %206, %209 : vector<1x256xf32>
      %c23 = arith.constant 23 : index
      %211 = memref.load %arg2[%c23] : memref<99xf32, #tpu.memory_space<smem>>
      %212 = vector.broadcast %211 : f32 to vector<1x256xf32>
      %213 = arith.mulf %212, %18 : vector<1x256xf32>
      %214 = arith.addf %210, %213 : vector<1x256xf32>
      %c72 = arith.constant 72 : index
      %215 = memref.load %arg2[%c72] : memref<99xf32, #tpu.memory_space<smem>>
      %216 = vector.broadcast %215 : f32 to vector<1x256xf32>
      %217 = arith.mulf %216, %21 : vector<1x256xf32>
      %218 = arith.addf %214, %217 : vector<1x256xf32>
      %c30 = arith.constant 30 : index
      %219 = memref.load %arg2[%c30] : memref<99xf32, #tpu.memory_space<smem>>
      %220 = vector.broadcast %219 : f32 to vector<1x256xf32>
      %221 = arith.mulf %220, %33 : vector<1x256xf32>
      %222 = arith.addf %218, %221 : vector<1x256xf32>
      %c79 = arith.constant 79 : index
      %223 = memref.load %arg2[%c79] : memref<99xf32, #tpu.memory_space<smem>>
      %224 = vector.broadcast %223 : f32 to vector<1x256xf32>
      %225 = arith.mulf %224, %51 : vector<1x256xf32>
      %226 = arith.addf %222, %225 : vector<1x256xf32>
      %c37 = arith.constant 37 : index
      %227 = memref.load %arg2[%c37] : memref<99xf32, #tpu.memory_space<smem>>
      %228 = vector.broadcast %227 : f32 to vector<1x256xf32>
      %229 = arith.mulf %228, %36 : vector<1x256xf32>
      %230 = arith.addf %226, %229 : vector<1x256xf32>
      %c86 = arith.constant 86 : index
      %231 = memref.load %arg2[%c86] : memref<99xf32, #tpu.memory_space<smem>>
      %232 = vector.broadcast %231 : f32 to vector<1x256xf32>
      %233 = arith.mulf %232, %54 : vector<1x256xf32>
      %234 = arith.addf %230, %233 : vector<1x256xf32>
      %c44 = arith.constant 44 : index
      %235 = memref.load %arg2[%c44] : memref<99xf32, #tpu.memory_space<smem>>
      %236 = vector.broadcast %235 : f32 to vector<1x256xf32>
      %237 = arith.mulf %236, %39 : vector<1x256xf32>
      %238 = arith.addf %234, %237 : vector<1x256xf32>
      %c93 = arith.constant 93 : index
      %239 = memref.load %arg2[%c93] : memref<99xf32, #tpu.memory_space<smem>>
      %240 = vector.broadcast %239 : f32 to vector<1x256xf32>
      %241 = arith.mulf %240, %57 : vector<1x256xf32>
      %242 = arith.addf %238, %241 : vector<1x256xf32>
      %cst_42 = arith.constant 0.000000e+00 : f32
      %243 = vector.broadcast %cst_42 : f32 to vector<1x1xf32>
      %244 = vector.extract_strided_slice %242 {offsets = [0, 0], sizes = [1, 255], strides = [1, 1]} : vector<1x256xf32> to vector<1x255xf32>
      %245 = tpu.concatenate %243, %244 in 1 : vector<1x1xf32>, vector<1x255xf32> -> vector<1x256xf32>
      %c2_43 = arith.constant 2 : index
      %c0_44 = arith.constant 0 : index
      %246 = vector.load %arg3[%c2_43, %c0_44] : memref<7x256xf32, #tpu.memory_space<vmem>>, vector<1x256xf32>
      %247 = arith.mulf %245, %246 : vector<1x256xf32>
      %248 = arith.addf %185, %247 : vector<1x256xf32>
      %cst_45 = arith.constant 0.000000e+00 : f32
      %249 = vector.broadcast %cst_45 : f32 to vector<1x256xf32>
      %c3 = arith.constant 3 : index
      %250 = memref.load %arg2[%c3] : memref<99xf32, #tpu.memory_space<smem>>
      %251 = vector.broadcast %250 : f32 to vector<1x256xf32>
      %252 = arith.mulf %251, %24 : vector<1x256xf32>
      %253 = arith.addf %249, %252 : vector<1x256xf32>
      %c52 = arith.constant 52 : index
      %254 = memref.load %arg2[%c52] : memref<99xf32, #tpu.memory_space<smem>>
      %255 = vector.broadcast %254 : f32 to vector<1x256xf32>
      %256 = arith.mulf %255, %42 : vector<1x256xf32>
      %257 = arith.addf %253, %256 : vector<1x256xf32>
      %c10 = arith.constant 10 : index
      %258 = memref.load %arg2[%c10] : memref<99xf32, #tpu.memory_space<smem>>
      %259 = vector.broadcast %258 : f32 to vector<1x256xf32>
      %260 = arith.mulf %259, %27 : vector<1x256xf32>
      %261 = arith.addf %257, %260 : vector<1x256xf32>
      %c59 = arith.constant 59 : index
      %262 = memref.load %arg2[%c59] : memref<99xf32, #tpu.memory_space<smem>>
      %263 = vector.broadcast %262 : f32 to vector<1x256xf32>
      %264 = arith.mulf %263, %45 : vector<1x256xf32>
      %265 = arith.addf %261, %264 : vector<1x256xf32>
      %c17 = arith.constant 17 : index
      %266 = memref.load %arg2[%c17] : memref<99xf32, #tpu.memory_space<smem>>
      %267 = vector.broadcast %266 : f32 to vector<1x256xf32>
      %268 = arith.mulf %267, %30 : vector<1x256xf32>
      %269 = arith.addf %265, %268 : vector<1x256xf32>
      %c66 = arith.constant 66 : index
      %270 = memref.load %arg2[%c66] : memref<99xf32, #tpu.memory_space<smem>>
      %271 = vector.broadcast %270 : f32 to vector<1x256xf32>
      %272 = arith.mulf %271, %48 : vector<1x256xf32>
      %273 = arith.addf %269, %272 : vector<1x256xf32>
      %c24 = arith.constant 24 : index
      %274 = memref.load %arg2[%c24] : memref<99xf32, #tpu.memory_space<smem>>
      %275 = vector.broadcast %274 : f32 to vector<1x256xf32>
      %276 = arith.mulf %275, %18 : vector<1x256xf32>
      %277 = arith.addf %273, %276 : vector<1x256xf32>
      %c73 = arith.constant 73 : index
      %278 = memref.load %arg2[%c73] : memref<99xf32, #tpu.memory_space<smem>>
      %279 = vector.broadcast %278 : f32 to vector<1x256xf32>
      %280 = arith.mulf %279, %21 : vector<1x256xf32>
      %281 = arith.addf %277, %280 : vector<1x256xf32>
      %c31 = arith.constant 31 : index
      %282 = memref.load %arg2[%c31] : memref<99xf32, #tpu.memory_space<smem>>
      %283 = vector.broadcast %282 : f32 to vector<1x256xf32>
      %284 = arith.mulf %283, %33 : vector<1x256xf32>
      %285 = arith.addf %281, %284 : vector<1x256xf32>
      %c80 = arith.constant 80 : index
      %286 = memref.load %arg2[%c80] : memref<99xf32, #tpu.memory_space<smem>>
      %287 = vector.broadcast %286 : f32 to vector<1x256xf32>
      %288 = arith.mulf %287, %51 : vector<1x256xf32>
      %289 = arith.addf %285, %288 : vector<1x256xf32>
      %c38 = arith.constant 38 : index
      %290 = memref.load %arg2[%c38] : memref<99xf32, #tpu.memory_space<smem>>
      %291 = vector.broadcast %290 : f32 to vector<1x256xf32>
      %292 = arith.mulf %291, %36 : vector<1x256xf32>
      %293 = arith.addf %289, %292 : vector<1x256xf32>
      %c87 = arith.constant 87 : index
      %294 = memref.load %arg2[%c87] : memref<99xf32, #tpu.memory_space<smem>>
      %295 = vector.broadcast %294 : f32 to vector<1x256xf32>
      %296 = arith.mulf %295, %54 : vector<1x256xf32>
      %297 = arith.addf %293, %296 : vector<1x256xf32>
      %c45 = arith.constant 45 : index
      %298 = memref.load %arg2[%c45] : memref<99xf32, #tpu.memory_space<smem>>
      %299 = vector.broadcast %298 : f32 to vector<1x256xf32>
      %300 = arith.mulf %299, %39 : vector<1x256xf32>
      %301 = arith.addf %297, %300 : vector<1x256xf32>
      %c94 = arith.constant 94 : index
      %302 = memref.load %arg2[%c94] : memref<99xf32, #tpu.memory_space<smem>>
      %303 = vector.broadcast %302 : f32 to vector<1x256xf32>
      %304 = arith.mulf %303, %57 : vector<1x256xf32>
      %305 = arith.addf %301, %304 : vector<1x256xf32>
      %306 = arith.addf %248, %305 : vector<1x256xf32>
      %cst_46 = arith.constant 0.000000e+00 : f32
      %307 = vector.broadcast %cst_46 : f32 to vector<1x256xf32>
      %c4 = arith.constant 4 : index
      %308 = memref.load %arg2[%c4] : memref<99xf32, #tpu.memory_space<smem>>
      %309 = vector.broadcast %308 : f32 to vector<1x256xf32>
      %310 = arith.mulf %309, %24 : vector<1x256xf32>
      %311 = arith.addf %307, %310 : vector<1x256xf32>
      %c53 = arith.constant 53 : index
      %312 = memref.load %arg2[%c53] : memref<99xf32, #tpu.memory_space<smem>>
      %313 = vector.broadcast %312 : f32 to vector<1x256xf32>
      %314 = arith.mulf %313, %42 : vector<1x256xf32>
      %315 = arith.addf %311, %314 : vector<1x256xf32>
      %c11 = arith.constant 11 : index
      %316 = memref.load %arg2[%c11] : memref<99xf32, #tpu.memory_space<smem>>
      %317 = vector.broadcast %316 : f32 to vector<1x256xf32>
      %318 = arith.mulf %317, %27 : vector<1x256xf32>
      %319 = arith.addf %315, %318 : vector<1x256xf32>
      %c60 = arith.constant 60 : index
      %320 = memref.load %arg2[%c60] : memref<99xf32, #tpu.memory_space<smem>>
      %321 = vector.broadcast %320 : f32 to vector<1x256xf32>
      %322 = arith.mulf %321, %45 : vector<1x256xf32>
      %323 = arith.addf %319, %322 : vector<1x256xf32>
      %c18 = arith.constant 18 : index
      %324 = memref.load %arg2[%c18] : memref<99xf32, #tpu.memory_space<smem>>
      %325 = vector.broadcast %324 : f32 to vector<1x256xf32>
      %326 = arith.mulf %325, %30 : vector<1x256xf32>
      %327 = arith.addf %323, %326 : vector<1x256xf32>
      %c67 = arith.constant 67 : index
      %328 = memref.load %arg2[%c67] : memref<99xf32, #tpu.memory_space<smem>>
      %329 = vector.broadcast %328 : f32 to vector<1x256xf32>
      %330 = arith.mulf %329, %48 : vector<1x256xf32>
      %331 = arith.addf %327, %330 : vector<1x256xf32>
      %c25 = arith.constant 25 : index
      %332 = memref.load %arg2[%c25] : memref<99xf32, #tpu.memory_space<smem>>
      %333 = vector.broadcast %332 : f32 to vector<1x256xf32>
      %334 = arith.mulf %333, %18 : vector<1x256xf32>
      %335 = arith.addf %331, %334 : vector<1x256xf32>
      %c74 = arith.constant 74 : index
      %336 = memref.load %arg2[%c74] : memref<99xf32, #tpu.memory_space<smem>>
      %337 = vector.broadcast %336 : f32 to vector<1x256xf32>
      %338 = arith.mulf %337, %21 : vector<1x256xf32>
      %339 = arith.addf %335, %338 : vector<1x256xf32>
      %c32 = arith.constant 32 : index
      %340 = memref.load %arg2[%c32] : memref<99xf32, #tpu.memory_space<smem>>
      %341 = vector.broadcast %340 : f32 to vector<1x256xf32>
      %342 = arith.mulf %341, %33 : vector<1x256xf32>
      %343 = arith.addf %339, %342 : vector<1x256xf32>
      %c81 = arith.constant 81 : index
      %344 = memref.load %arg2[%c81] : memref<99xf32, #tpu.memory_space<smem>>
      %345 = vector.broadcast %344 : f32 to vector<1x256xf32>
      %346 = arith.mulf %345, %51 : vector<1x256xf32>
      %347 = arith.addf %343, %346 : vector<1x256xf32>
      %c39 = arith.constant 39 : index
      %348 = memref.load %arg2[%c39] : memref<99xf32, #tpu.memory_space<smem>>
      %349 = vector.broadcast %348 : f32 to vector<1x256xf32>
      %350 = arith.mulf %349, %36 : vector<1x256xf32>
      %351 = arith.addf %347, %350 : vector<1x256xf32>
      %c88 = arith.constant 88 : index
      %352 = memref.load %arg2[%c88] : memref<99xf32, #tpu.memory_space<smem>>
      %353 = vector.broadcast %352 : f32 to vector<1x256xf32>
      %354 = arith.mulf %353, %54 : vector<1x256xf32>
      %355 = arith.addf %351, %354 : vector<1x256xf32>
      %c46 = arith.constant 46 : index
      %356 = memref.load %arg2[%c46] : memref<99xf32, #tpu.memory_space<smem>>
      %357 = vector.broadcast %356 : f32 to vector<1x256xf32>
      %358 = arith.mulf %357, %39 : vector<1x256xf32>
      %359 = arith.addf %355, %358 : vector<1x256xf32>
      %c95 = arith.constant 95 : index
      %360 = memref.load %arg2[%c95] : memref<99xf32, #tpu.memory_space<smem>>
      %361 = vector.broadcast %360 : f32 to vector<1x256xf32>
      %362 = arith.mulf %361, %57 : vector<1x256xf32>
      %363 = arith.addf %359, %362 : vector<1x256xf32>
      %cst_47 = arith.constant 0.000000e+00 : f32
      %364 = vector.broadcast %cst_47 : f32 to vector<1x1xf32>
      %365 = vector.extract_strided_slice %363 {offsets = [0, 1], sizes = [1, 255], strides = [1, 1]} : vector<1x256xf32> to vector<1x255xf32>
      %366 = tpu.concatenate %365, %364 in 1 : vector<1x255xf32>, vector<1x1xf32> -> vector<1x256xf32>
      %c4_48 = arith.constant 4 : index
      %c0_49 = arith.constant 0 : index
      %367 = vector.load %arg3[%c4_48, %c0_49] : memref<7x256xf32, #tpu.memory_space<vmem>>, vector<1x256xf32>
      %368 = arith.mulf %366, %367 : vector<1x256xf32>
      %369 = arith.addf %306, %368 : vector<1x256xf32>
      %cst_50 = arith.constant 0.000000e+00 : f32
      %370 = vector.broadcast %cst_50 : f32 to vector<1x256xf32>
      %c5 = arith.constant 5 : index
      %371 = memref.load %arg2[%c5] : memref<99xf32, #tpu.memory_space<smem>>
      %372 = vector.broadcast %371 : f32 to vector<1x256xf32>
      %373 = arith.mulf %372, %24 : vector<1x256xf32>
      %374 = arith.addf %370, %373 : vector<1x256xf32>
      %c54 = arith.constant 54 : index
      %375 = memref.load %arg2[%c54] : memref<99xf32, #tpu.memory_space<smem>>
      %376 = vector.broadcast %375 : f32 to vector<1x256xf32>
      %377 = arith.mulf %376, %42 : vector<1x256xf32>
      %378 = arith.addf %374, %377 : vector<1x256xf32>
      %c12 = arith.constant 12 : index
      %379 = memref.load %arg2[%c12] : memref<99xf32, #tpu.memory_space<smem>>
      %380 = vector.broadcast %379 : f32 to vector<1x256xf32>
      %381 = arith.mulf %380, %27 : vector<1x256xf32>
      %382 = arith.addf %378, %381 : vector<1x256xf32>
      %c61 = arith.constant 61 : index
      %383 = memref.load %arg2[%c61] : memref<99xf32, #tpu.memory_space<smem>>
      %384 = vector.broadcast %383 : f32 to vector<1x256xf32>
      %385 = arith.mulf %384, %45 : vector<1x256xf32>
      %386 = arith.addf %382, %385 : vector<1x256xf32>
      %c19 = arith.constant 19 : index
      %387 = memref.load %arg2[%c19] : memref<99xf32, #tpu.memory_space<smem>>
      %388 = vector.broadcast %387 : f32 to vector<1x256xf32>
      %389 = arith.mulf %388, %30 : vector<1x256xf32>
      %390 = arith.addf %386, %389 : vector<1x256xf32>
      %c68 = arith.constant 68 : index
      %391 = memref.load %arg2[%c68] : memref<99xf32, #tpu.memory_space<smem>>
      %392 = vector.broadcast %391 : f32 to vector<1x256xf32>
      %393 = arith.mulf %392, %48 : vector<1x256xf32>
      %394 = arith.addf %390, %393 : vector<1x256xf32>
      %c26 = arith.constant 26 : index
      %395 = memref.load %arg2[%c26] : memref<99xf32, #tpu.memory_space<smem>>
      %396 = vector.broadcast %395 : f32 to vector<1x256xf32>
      %397 = arith.mulf %396, %18 : vector<1x256xf32>
      %398 = arith.addf %394, %397 : vector<1x256xf32>
      %c75 = arith.constant 75 : index
      %399 = memref.load %arg2[%c75] : memref<99xf32, #tpu.memory_space<smem>>
      %400 = vector.broadcast %399 : f32 to vector<1x256xf32>
      %401 = arith.mulf %400, %21 : vector<1x256xf32>
      %402 = arith.addf %398, %401 : vector<1x256xf32>
      %c33 = arith.constant 33 : index
      %403 = memref.load %arg2[%c33] : memref<99xf32, #tpu.memory_space<smem>>
      %404 = vector.broadcast %403 : f32 to vector<1x256xf32>
      %405 = arith.mulf %404, %33 : vector<1x256xf32>
      %406 = arith.addf %402, %405 : vector<1x256xf32>
      %c82 = arith.constant 82 : index
      %407 = memref.load %arg2[%c82] : memref<99xf32, #tpu.memory_space<smem>>
      %408 = vector.broadcast %407 : f32 to vector<1x256xf32>
      %409 = arith.mulf %408, %51 : vector<1x256xf32>
      %410 = arith.addf %406, %409 : vector<1x256xf32>
      %c40 = arith.constant 40 : index
      %411 = memref.load %arg2[%c40] : memref<99xf32, #tpu.memory_space<smem>>
      %412 = vector.broadcast %411 : f32 to vector<1x256xf32>
      %413 = arith.mulf %412, %36 : vector<1x256xf32>
      %414 = arith.addf %410, %413 : vector<1x256xf32>
      %c89 = arith.constant 89 : index
      %415 = memref.load %arg2[%c89] : memref<99xf32, #tpu.memory_space<smem>>
      %416 = vector.broadcast %415 : f32 to vector<1x256xf32>
      %417 = arith.mulf %416, %54 : vector<1x256xf32>
      %418 = arith.addf %414, %417 : vector<1x256xf32>
      %c47 = arith.constant 47 : index
      %419 = memref.load %arg2[%c47] : memref<99xf32, #tpu.memory_space<smem>>
      %420 = vector.broadcast %419 : f32 to vector<1x256xf32>
      %421 = arith.mulf %420, %39 : vector<1x256xf32>
      %422 = arith.addf %418, %421 : vector<1x256xf32>
      %c96 = arith.constant 96 : index
      %423 = memref.load %arg2[%c96] : memref<99xf32, #tpu.memory_space<smem>>
      %424 = vector.broadcast %423 : f32 to vector<1x256xf32>
      %425 = arith.mulf %424, %57 : vector<1x256xf32>
      %426 = arith.addf %422, %425 : vector<1x256xf32>
      %cst_51 = arith.constant 0.000000e+00 : f32
      %427 = vector.broadcast %cst_51 : f32 to vector<1x2xf32>
      %428 = vector.extract_strided_slice %426 {offsets = [0, 2], sizes = [1, 254], strides = [1, 1]} : vector<1x256xf32> to vector<1x254xf32>
      %429 = tpu.concatenate %428, %427 in 1 : vector<1x254xf32>, vector<1x2xf32> -> vector<1x256xf32>
      %c5_52 = arith.constant 5 : index
      %c0_53 = arith.constant 0 : index
      %430 = vector.load %arg3[%c5_52, %c0_53] : memref<7x256xf32, #tpu.memory_space<vmem>>, vector<1x256xf32>
      %431 = arith.mulf %429, %430 : vector<1x256xf32>
      %432 = arith.addf %369, %431 : vector<1x256xf32>
      %cst_54 = arith.constant 0.000000e+00 : f32
      %433 = vector.broadcast %cst_54 : f32 to vector<1x256xf32>
      %c6 = arith.constant 6 : index
      %434 = memref.load %arg2[%c6] : memref<99xf32, #tpu.memory_space<smem>>
      %435 = vector.broadcast %434 : f32 to vector<1x256xf32>
      %436 = arith.mulf %435, %24 : vector<1x256xf32>
      %437 = arith.addf %433, %436 : vector<1x256xf32>
      %c55 = arith.constant 55 : index
      %438 = memref.load %arg2[%c55] : memref<99xf32, #tpu.memory_space<smem>>
      %439 = vector.broadcast %438 : f32 to vector<1x256xf32>
      %440 = arith.mulf %439, %42 : vector<1x256xf32>
      %441 = arith.addf %437, %440 : vector<1x256xf32>
      %c13 = arith.constant 13 : index
      %442 = memref.load %arg2[%c13] : memref<99xf32, #tpu.memory_space<smem>>
      %443 = vector.broadcast %442 : f32 to vector<1x256xf32>
      %444 = arith.mulf %443, %27 : vector<1x256xf32>
      %445 = arith.addf %441, %444 : vector<1x256xf32>
      %c62 = arith.constant 62 : index
      %446 = memref.load %arg2[%c62] : memref<99xf32, #tpu.memory_space<smem>>
      %447 = vector.broadcast %446 : f32 to vector<1x256xf32>
      %448 = arith.mulf %447, %45 : vector<1x256xf32>
      %449 = arith.addf %445, %448 : vector<1x256xf32>
      %c20 = arith.constant 20 : index
      %450 = memref.load %arg2[%c20] : memref<99xf32, #tpu.memory_space<smem>>
      %451 = vector.broadcast %450 : f32 to vector<1x256xf32>
      %452 = arith.mulf %451, %30 : vector<1x256xf32>
      %453 = arith.addf %449, %452 : vector<1x256xf32>
      %c69 = arith.constant 69 : index
      %454 = memref.load %arg2[%c69] : memref<99xf32, #tpu.memory_space<smem>>
      %455 = vector.broadcast %454 : f32 to vector<1x256xf32>
      %456 = arith.mulf %455, %48 : vector<1x256xf32>
      %457 = arith.addf %453, %456 : vector<1x256xf32>
      %c27 = arith.constant 27 : index
      %458 = memref.load %arg2[%c27] : memref<99xf32, #tpu.memory_space<smem>>
      %459 = vector.broadcast %458 : f32 to vector<1x256xf32>
      %460 = arith.mulf %459, %18 : vector<1x256xf32>
      %461 = arith.addf %457, %460 : vector<1x256xf32>
      %c76 = arith.constant 76 : index
      %462 = memref.load %arg2[%c76] : memref<99xf32, #tpu.memory_space<smem>>
      %463 = vector.broadcast %462 : f32 to vector<1x256xf32>
      %464 = arith.mulf %463, %21 : vector<1x256xf32>
      %465 = arith.addf %461, %464 : vector<1x256xf32>
      %c34 = arith.constant 34 : index
      %466 = memref.load %arg2[%c34] : memref<99xf32, #tpu.memory_space<smem>>
      %467 = vector.broadcast %466 : f32 to vector<1x256xf32>
      %468 = arith.mulf %467, %33 : vector<1x256xf32>
      %469 = arith.addf %465, %468 : vector<1x256xf32>
      %c83 = arith.constant 83 : index
      %470 = memref.load %arg2[%c83] : memref<99xf32, #tpu.memory_space<smem>>
      %471 = vector.broadcast %470 : f32 to vector<1x256xf32>
      %472 = arith.mulf %471, %51 : vector<1x256xf32>
      %473 = arith.addf %469, %472 : vector<1x256xf32>
      %c41 = arith.constant 41 : index
      %474 = memref.load %arg2[%c41] : memref<99xf32, #tpu.memory_space<smem>>
      %475 = vector.broadcast %474 : f32 to vector<1x256xf32>
      %476 = arith.mulf %475, %36 : vector<1x256xf32>
      %477 = arith.addf %473, %476 : vector<1x256xf32>
      %c90 = arith.constant 90 : index
      %478 = memref.load %arg2[%c90] : memref<99xf32, #tpu.memory_space<smem>>
      %479 = vector.broadcast %478 : f32 to vector<1x256xf32>
      %480 = arith.mulf %479, %54 : vector<1x256xf32>
      %481 = arith.addf %477, %480 : vector<1x256xf32>
      %c48 = arith.constant 48 : index
      %482 = memref.load %arg2[%c48] : memref<99xf32, #tpu.memory_space<smem>>
      %483 = vector.broadcast %482 : f32 to vector<1x256xf32>
      %484 = arith.mulf %483, %39 : vector<1x256xf32>
      %485 = arith.addf %481, %484 : vector<1x256xf32>
      %c97 = arith.constant 97 : index
      %486 = memref.load %arg2[%c97] : memref<99xf32, #tpu.memory_space<smem>>
      %487 = vector.broadcast %486 : f32 to vector<1x256xf32>
      %488 = arith.mulf %487, %57 : vector<1x256xf32>
      %489 = arith.addf %485, %488 : vector<1x256xf32>
      %cst_55 = arith.constant 0.000000e+00 : f32
      %490 = vector.broadcast %cst_55 : f32 to vector<1x3xf32>
      %491 = vector.extract_strided_slice %489 {offsets = [0, 3], sizes = [1, 253], strides = [1, 1]} : vector<1x256xf32> to vector<1x253xf32>
      %492 = tpu.concatenate %491, %490 in 1 : vector<1x253xf32>, vector<1x3xf32> -> vector<1x256xf32>
      %c6_56 = arith.constant 6 : index
      %c0_57 = arith.constant 0 : index
      %493 = vector.load %arg3[%c6_56, %c0_57] : memref<7x256xf32, #tpu.memory_space<vmem>>, vector<1x256xf32>
      %494 = arith.mulf %492, %493 : vector<1x256xf32>
      %495 = arith.addf %432, %494 : vector<1x256xf32>
      %496 = vector.broadcast %58 : f32 to vector<1x256xf32>
      %497 = arith.addf %495, %496 : vector<1x256xf32>
      %498 = arith.negf %497 : vector<1x256xf32>
      %499 = math.exp %498 : vector<1x256xf32>
      %cst_58 = arith.constant 1.000000e+00 : f32
      %500 = vector.broadcast %cst_58 : f32 to vector<1x256xf32>
      %501 = arith.addf %500, %499 : vector<1x256xf32>
      %502 = arith.divf %500, %501 : vector<1x256xf32>
      %c0_59 = arith.constant 0 : index
      %c0_60 = arith.constant 0 : index
      %c0_61 = arith.constant 0 : index
      %503 = vector.load %arg5[%c0_59, %c0_60, %c0_61] : memref<1x1x256xf32, #tpu.memory_space<vmem>>, vector<1x1x256xf32>
      %504 = vector.shape_cast %503 : vector<1x1x256xf32> to vector<1x256xf32>
      %505 = vector.shape_cast %502 : vector<1x256xf32> to vector<1x1x256xf32>
      tpu.vector_store %arg5[%c0_59, %c0_60, %c0_61], %505 {strides = array<i32>} : memref<1x1x256xf32, #tpu.memory_space<vmem>>, vector<1x1x256xf32>,
    } else {
    }
    return
  }
  func.func @transform_0(%arg0: i32, %arg1: i32) -> i32 {
    %c0_i32 = arith.constant 0 : i32
    %c0_i32_0 = arith.constant 0 : i32
    return %c0_i32 : i32
  }
  func.func @transform_1(%arg0: i32, %arg1: i32) -> (i32, i32) {
    %c0_i32 = arith.constant 0 : i32
    %c0_i32_0 = arith.constant 0 : i32
    %c0_i32_1 = arith.constant 0 : i32
    return %c0_i32, %c0_i32_0 : i32, i32
  }
  func.func @transform_2(%arg0: i32, %arg1: i32) -> (i32, i32, i32) {
    %c0_i32 = arith.constant 0 : i32
    %c0_i32_0 = arith.constant 0 : i32
    return %arg0, %arg1, %c0_i32 : i32, i32, i32
  }
  func.func @transform_3(%arg0: i32, %arg1: i32) -> (i32, i32, i32) {
    %c0_i32 = arith.constant 0 : i32
    %c0_i32_0 = arith.constant 0 : i32
    %c0_i32_1 = arith.constant 0 : i32
    return %arg0, %c0_i32, %c0_i32_0 : i32, i32, i32
  }
}

</mosaic_0001>

<llo_original>
// kernel: tpu_custom_call.1
$region0: #{tpu_custom_call.1}
  #allocation0 [shape = 'u32[]', space=smem, size = 0x4, offset = 0x4, fixed_abs, tag = 'smem constant byte address 0x4 - core index']
  #allocation1 [shape = 'u32[144,128]{1,0:T(1,128)}', space=vmem, size = 0x12000, scoped, tag = 'internal scratch']
  #allocation2 [shape = 'f32[1,256]{1,0:T(1,128)}', space=vmem, size = 0x400, scoped, tag = 'scratch operand']
  #allocation3 [shape = 'f32[1,256]{1,0:T(1,128)}', space=vmem, size = 0x400, scoped, tag = 'scratch operand']
  %s0 = inlined_call_operand.hbm [shape: f32[99], index: 0, kind: input, shape index: {}]
  %s1 = inlined_call_operand.hbm [shape: f32[7,256], index: 1, kind: input, shape index: {}]
  %s2 = inlined_call_operand.hbm [shape: f32[2,4,256], index: 2, kind: input, shape index: {}]
  %s3 = inlined_call_operand.hbm [shape: f32[2,1,256], index: 3, kind: output, shape index: {}]
  %s4 = sld [smem:[#allocation0]]
  $region65: #{tpu_custom_call.1} parent=0
    _
  %s6 = ssub.s32 1, %s4
  %s7 = scalar_select 0, %s6, %s4
  $region1: #{tpu_custom_call.1} parent=0
    #allocation4 [shape = 'u8[512]{0}', space=smem, size = 0x200, scoped, tag = 'input window, operand 0, single buffered']
    #allocation5 [shape = 's32[2]{0}', space=sflag, size = 0x8, scoped, tag = 'scoped memory for tpu_custom_call.1']
    #allocation6 [shape = 's32[2]{0}', space=sflag, size = 0x8, scoped, tag = 'scoped memory for tpu_custom_call.1']
    #allocation7 [shape = 's32[2]{0}', space=sflag, size = 0x8, scoped, tag = 'scoped memory for tpu_custom_call.1']
    #allocation8 [shape = 'u8[8192]{0}', space=vmem, size = 0x2000, scoped, tag = 'input window, operand 1, single buffered']
    #allocation9 [shape = 'u8[8192]{0}', space=vmem, size = 0x2000, scoped, tag = 'input window, operand 2']
    #allocation10 [shape = 's32[2]{0}', space=sflag, size = 0x8, scoped, tag = 'scoped memory for tpu_custom_call.1']
    #allocation11 [shape = 'u8[2048]{0}', space=vmem, size = 0x800, scoped, tag = 'output window, operand 0']
    %8 = vsyncpa [#allocation7], 0
    %9 = vsyncpa [#allocation5], 0
    %10 = vsyncpa [#allocation10], 0
    %s11 = scalar_lea.sflag [#allocation10], 1
    %12 = vsyncpa %s11, 0
    %13 = vsyncpa [#allocation6], 0
    %s14 = scalar_lea.sflag [#allocation6], 1
    %15 = vsyncpa %s14, 0
    loop: start=0, step=1, limit=4
    $region2: #{tpu_custom_call.1} parent=1 // loop_pre_header
      _
    $region3: #{tpu_custom_call.1} parent=1 // loop_header
      %s17 = sphi 0, %s21
      %p18 = scmp.ge.s32.totalorder %s17, 4
      %s24 = sphi 0, %s36
      %s25 = sphi 0, %s32
      %s26 = sphi 0, %s24
      %s27 = sphi 0, %s25
      %s28 = sphi 0, %s26
      %s29 = sphi 0, %s27
      %s37 = sphi 0, %s37
      %s39 = sphi 0, %s37
      %s40 = sphi 0, %s39
      %s54 = sphi 0, %s40
      %s58 = sphi 0, %s58
      %s60 = sphi 0, %s58
      %s61 = sphi 0, %s60
      %s75 = sphi 0, %s61
      %s83 = sphi 0, %s85
      %s86 = sphi 0, %s83
      %s87 = sphi 0, %s86
      %s103 = sphi 0, %s87
      %s109 = sphi 0, %s111
      %s112 = sphi 0, %s109
      %s113 = sphi 0, %s112
      %s129 = sphi 0, %s113
    $region4: #{tpu_custom_call.1} parent=1 // loop_header_branch
      %20 = sbr.rel (%p18) target = $region8
    $region5: #{tpu_custom_call.1} parent=1 // loop_body
      %s22 = ssub.s32 %s17, 1
      %s23 = ssub.s32 %s17, 2
      %s30 = sadd.s32 1, %s25
      %p31 = scmp.ge.s32.totalorder %s30, 1
      %s32 = scalar_select %p31, 0, %s30
      %s33 = sadd.s32 1, %s24
      %s34 = scalar_select %p31, %s33, %s24
      %p35 = scmp.ge.s32.totalorder %s34, 2
      %s36 = scalar_select %p35, 0, %s34
      %s38 = sadd.s32 %s37, 1
      %p41 = scmp.eq.s32.totalorder %s17, 1
      %p42 = scmp.ne.s32.totalorder %s37, %s39
      %p43 = scmp.eq.s32.totalorder %s17, 0
      %p44 = por %p42, %p43
      %p45 = scmp.ne.s32.totalorder %s37, %s39
      %p46 = scmp.eq.s32.totalorder %s22, 1
      %p47 = por %p45, %p46
      %p48 = scmp.ne.s32.totalorder %s39, %s40
      %p49 = scmp.eq.s32.totalorder %s22, 0
      %p50 = por %p48, %p49
      %p51 = scmp.ne.s32.totalorder %s39, %s40
      %p52 = scmp.eq.s32.totalorder %s23, 1
      %p53 = por %p51, %p52
      %p55 = scmp.ne.s32.totalorder %s40, %s54
      %p56 = scmp.eq.s32.totalorder %s23, 0
      %p57 = por %p55, %p56
      %s59 = sadd.s32 %s58, 1
      %p62 = scmp.eq.s32.totalorder %s17, 1
      %p63 = scmp.ne.s32.totalorder %s58, %s60
      %p64 = scmp.eq.s32.totalorder %s17, 0
      %p65 = por %p63, %p64
      %p66 = scmp.ne.s32.totalorder %s58, %s60
      %p67 = scmp.eq.s32.totalorder %s22, 1
      %p68 = por %p66, %p67
      %p69 = scmp.ne.s32.totalorder %s60, %s61
      %p70 = scmp.eq.s32.totalorder %s22, 0
      %p71 = por %p69, %p70
      %p72 = scmp.ne.s32.totalorder %s60, %s61
      %p73 = scmp.eq.s32.totalorder %s23, 1
      %p74 = por %p72, %p73
      %p76 = scmp.ne.s32.totalorder %s61, %s75
      %p77 = scmp.eq.s32.totalorder %s23, 0
      %p78 = por %p76, %p77
      %s79 = ssub.s32 %s24, %s36
      %s80 = ssub.s32 %s25, %s32
      %s81 = sor.u32 %s79, %s80
      %p82 = scmp.eq.s32.totalorder %s81, 0
      %s84 = sadd.s32 %s83, 1
      %s85 = scalar_select %p82, %s83, %s84
      %p88 = pneg %p82
      %p89 = scmp.eq.s32.totalorder %s17, 1
      %p90 = por %p88, %p89
      %p91 = scmp.ne.s32.totalorder %s83, %s86
      %p92 = scmp.eq.s32.totalorder %s17, 0
      %p93 = por %p91, %p92
      %p94 = scmp.ne.s32.totalorder %s83, %s86
      %p95 = scmp.eq.s32.totalorder %s22, 1
      %p96 = por %p94, %p95
      %p97 = scmp.ne.s32.totalorder %s86, %s87
      %p98 = scmp.eq.s32.totalorder %s22, 0
      %p99 = por %p97, %p98
      %p100 = scmp.ne.s32.totalorder %s86, %s87
      %p101 = scmp.eq.s32.totalorder %s23, 1
      %p102 = por %p100, %p101
      %p104 = scmp.ne.s32.totalorder %s87, %s103
      %p105 = scmp.eq.s32.totalorder %s23, 0
      %p106 = por %p104, %p105
      %s107 = ssub.s32 %s24, %s36
      %p108 = scmp.eq.s32.totalorder %s107, 0
      %s110 = sadd.s32 %s109, 1
      %s111 = scalar_select %p108, %s109, %s110
      %p114 = pneg %p108
      %p115 = scmp.eq.s32.totalorder %s17, 1
      %p116 = por %p114, %p115
      %p117 = scmp.ne.s32.totalorder %s109, %s112
      %p118 = scmp.eq.s32.totalorder %s17, 0
      %p119 = por %p117, %p118
      %p120 = scmp.ne.s32.totalorder %s109, %s112
      %p121 = scmp.eq.s32.totalorder %s22, 1
      %p122 = por %p120, %p121
      %p123 = scmp.ne.s32.totalorder %s112, %s113
      %p124 = scmp.eq.s32.totalorder %s22, 0
      %p125 = por %p123, %p124
      %p126 = scmp.ne.s32.totalorder %s112, %s113
      %p127 = scmp.eq.s32.totalorder %s23, 1
      %p128 = por %p126, %p127
      %p130 = scmp.ne.s32.totalorder %s113, %s129
      %p131 = scmp.eq.s32.totalorder %s23, 0
      %p132 = por %p130, %p131
      %p133 = scmp.le.s32.totalorder 1, %s17
      %p134 = scmp.lt.s32.totalorder %s17, 3
      %p135 = pnand %p133, %p134
      %p136 = pneg %p135
      // Predicated region
      $region9: #{tpu_custom_call.1} parent=5 // pred_check
        _
      $region10: #{tpu_custom_call.1} parent=5 // pred_check_branch
        %138 = sbr.rel (%p135) target = $region12
      $region11: #{tpu_custom_call.1} parent=5 // pred_region
        %s139 = ssub.s32 %s17, 1
        // Predicated region
        $region13: #{tpu_custom_call.1} parent=11 // pred_check
          %p140 = pneg %p50
        $region14: #{tpu_custom_call.1} parent=11 // pred_check_branch
          %142 = sbr.rel (%p140) target = $region16
        $region15: #{tpu_custom_call.1} parent=11 // pred_region
          %s144 = ssub.s32 16, 16
          %145 = vsyncadd [#allocation7], %s144
          %148 = dma.hbm_to_smem %s0, 16, [#allocation4], [#allocation7]
        $region16: #{tpu_custom_call.1} parent=11 // pred_fallthru
          _
        // Predicated region
        $region17: #{tpu_custom_call.1} parent=11 // pred_check
          %p149 = pneg %p71
        $region18: #{tpu_custom_call.1} parent=11 // pred_check_branch
          %151 = sbr.rel (%p149) target = $region20
        $region19: #{tpu_custom_call.1} parent=11 // pred_region
          %s153 = ssub.s32 256, 256
          %154 = vsyncadd [#allocation5], %s153
          %s156 = sshll.u32 [#allocation8], 4
          %s157 = int_to_ptr.vmem [resolvable:$true] %s156
          %159 = dma.hbm_to_vmem [thread:$0]  %s1, 256, %s157, [#allocation5]
        $region20: #{tpu_custom_call.1} parent=11 // pred_fallthru
          _
      $region12: #{tpu_custom_call.1} parent=5 // pred_fallthru
        _
      %p160 = scmp.lt.s32.totalorder %s17, 2
      // Predicated region
      $region21: #{tpu_custom_call.1} parent=5 // pred_check
        %p161 = pneg %p160
      $region22: #{tpu_custom_call.1} parent=5 // pred_check_branch
        %163 = sbr.rel (%p161) target = $region24
      $region23: #{tpu_custom_call.1} parent=5 // pred_region
        // Predicated region
        $region25: #{tpu_custom_call.1} parent=23 // pred_check
          %p164 = pneg %p93
        $region26: #{tpu_custom_call.1} parent=23 // pred_check_branch
          %166 = sbr.rel (%p164) target = $region28
        $region27: #{tpu_custom_call.1} parent=23 // pred_region
          %s167 = sand.u32 %s83, 1
          %s168 = scalar_lea.sflag [#allocation10], %s167
          %s169 = sand.u32 %s83, 1
          %s170 = smul.addr %s169, 8
          %s171 = scalar_lea.vmem [#allocation9], %s170
          %s173 = ssub.s32 128, 128
          %174 = vsyncadd %s168, %s173
          %s175 = smul.addr %s25, 2
          %s176 = smul.addr %s24, 2
          %s177 = sadd.s32 %s175, %s176
          %s178 = smul.addr %s177, 64
          %s179 = scalar_lea.hbm %s2, %s178
          %s181 = sshll.u32 %s171, 4
          %s182 = int_to_ptr.vmem [resolvable:$true] %s181
          %184 = dma.hbm_to_vmem [thread:$0]  %s179, 128, %s182, %s168
        $region28: #{tpu_custom_call.1} parent=23 // pred_fallthru
          _
      $region24: #{tpu_custom_call.1} parent=5 // pred_fallthru
        _
      %p185 = scmp.le.s32.totalorder 1, %s17
      %p186 = scmp.lt.s32.totalorder %s17, 3
      %p187 = pnand %p185, %p186
      %p188 = pneg %p187
      // Predicated region
      $region29: #{tpu_custom_call.1} parent=5 // pred_check
        _
      $region30: #{tpu_custom_call.1} parent=5 // pred_check_branch
        %190 = sbr.rel (%p187) target = $region32
      $region31: #{tpu_custom_call.1} parent=5 // pred_region
        %s191 = ssub.s32 %s17, 1
        // Predicated region
        $region33: #{tpu_custom_call.1} parent=31 // pred_check
          %p192 = pneg %p50
        $region34: #{tpu_custom_call.1} parent=31 // pred_check_branch
          %194 = sbr.rel (%p192) target = $region36
        $region35: #{tpu_custom_call.1} parent=31 // pred_region
          %195 = dma.done [#allocation7], 16
        $region36: #{tpu_custom_call.1} parent=31 // pred_fallthru
          _
        // Predicated region
        $region37: #{tpu_custom_call.1} parent=31 // pred_check
          %p196 = pneg %p71
        $region38: #{tpu_custom_call.1} parent=31 // pred_check_branch
          %198 = sbr.rel (%p196) target = $region40
        $region39: #{tpu_custom_call.1} parent=31 // pred_region
          %199 = dma.done [#allocation5], 256
        $region40: #{tpu_custom_call.1} parent=31 // pred_fallthru
          _
        %s200 = sand.u32 %s86, 1
        %s201 = scalar_lea.sflag [#allocation10], %s200
        %s202 = sand.u32 %s86, 1
        %s203 = smul.addr %s202, 8
        %s204 = scalar_lea.vmem [#allocation9], %s203
        // Predicated region
        $region41: #{tpu_custom_call.1} parent=31 // pred_check
          %p205 = pneg %p99
        $region42: #{tpu_custom_call.1} parent=31 // pred_check_branch
          %207 = sbr.rel (%p205) target = $region44
        $region43: #{tpu_custom_call.1} parent=31 // pred_region
          %208 = dma.done %s201, 128
        $region44: #{tpu_custom_call.1} parent=31 // pred_fallthru
          _
        %209 = sfence
        %p210 = pneg %p50
        %p211 = pneg %p47
        %p212 = pneg %p71
        %p213 = pneg %p68
        %s214 = sand.u32 %s86, 1
        %s215 = scalar_lea.sflag [#allocation10], %s214
        %s216 = sand.u32 %s86, 1
        %s217 = smul.addr %s216, 8
        %s218 = scalar_lea.vmem [#allocation9], %s217
        %p219 = pneg %p99
        %p220 = pneg %p96
        %p221 = pneg %p125
        %p222 = pneg %p122
        %s223 = sand.u32 %s112, 1
        %s224 = scalar_lea.sflag [#allocation6], %s223
        %s225 = sand.u32 %s112, 1
        %s226 = smul.addr %s225, 2
        %s227 = scalar_lea.vmem [#allocation11], %s226
        %p228 = scmp.eq.s32.totalorder %s27, 0
        // Predicated region
        $region45: #{tpu_custom_call.1} parent=31 // pred_check
          %p229 = pneg %p228
        $region46: #{tpu_custom_call.1} parent=31 // pred_check_branch
          %231 = sbr.rel (%p229) target = $region48
        $region47: #{tpu_custom_call.1} parent=31 // pred_region
          %v232 = vlaneseq
          %vm233 = vcmp.ge.s32.totalorder %v232, 0
          %vm234 = vcmp.lt.s32.totalorder %v232, 256
          %vm235 = vmand %vm233, %vm234
          %236 = vst.msk [vmem:[#allocation2] sm:$0x3] %vm235, -inf
          %237 = vst.msk [vmem:[#allocation3] sm:$0x3] %vm235, 0.0
        $region48: #{tpu_custom_call.1} parent=31 // pred_fallthru
          _
        %v238 = vld [vmem:[#allocation2] sm:$0x3]
        %v239 = vld [vmem:[#allocation3] sm:$0x3]
        %v240 = vld [vmem:[%s204] sm:$0xff]
        %v242 = vcombine.high %v240, %v240
        %vm244 = vcmask 1043456
        %v245 = vsel %vm244, %v240, -inf
        %v246 = vrot.slane %v245, 4
        %v247 = vmax.f32 %v245, %v246
        %v248 = vrot.slane %v247, 2
        %v249 = vmax.f32 %v247, %v248
        %v250 = vrot.slane %v249, 1
        %v251 = vmax.f32 %v249, %v250
        %v252 = vsel %vm244, %v242, -inf
        %v253 = vrot.slane %v252, 4
        %v254 = vmax.f32 %v252, %v253
        %v255 = vrot.slane %v254, 2
        %v256 = vmax.f32 %v254, %v255
        %v257 = vrot.slane %v256, 1
        %v258 = vmax.f32 %v256, %v257
        %v261 = vcombine.low %v251, %v258
        %v263 = vunpack.c.l.s4 1966171168
        %v264 = vunpack.c.0.s8 %v263
        %v265 = vlaneseq
        %v266 = vshrl.u32 %v265, 7
        %v267 = vsub.s32 %v264, %v266
        %v268 = vrot.slane %v261, %v267
        %v270 = vunpack.c.l.s4 1966171168
        %v271 = vunpack.c.0.s8 %v270
        %v272 = vlaneseq
        %v273 = vshrl.u32 %v272, 7
        %v274 = vsub.s32 %v271, %v273
        %v275 = vrot.slane %v268, %v274
        %v277 = vmax.f32 %v238, %v275
        %v278 = vsel %vm244, %v240, 0.0
        %v279 = vrot.slane %v278, 4
        %v280 = vadd.f32 %v278, %v279
        %v281 = vrot.slane %v280, 2
        %v282 = vadd.f32 %v280, %v281
        %v283 = vrot.slane %v282, 1
        %v284 = vadd.f32 %v282, %v283
        %v285 = vsel %vm244, %v242, 0.0
        %v286 = vrot.slane %v285, 4
        %v287 = vadd.f32 %v285, %v286
        %v288 = vrot.slane %v287, 2
        %v289 = vadd.f32 %v287, %v288
        %v290 = vrot.slane %v289, 1
        %v291 = vadd.f32 %v289, %v290
        %v294 = vcombine.low %v284, %v291
        %v296 = vunpack.c.l.s4 1966171168
        %v297 = vunpack.c.0.s8 %v296
        %v298 = vlaneseq
        %v299 = vshrl.u32 %v298, 7
        %v300 = vsub.s32 %v297, %v299
        %v301 = vrot.slane %v294, %v300
        %v303 = vunpack.c.l.s4 1966171168
        %v304 = vunpack.c.0.s8 %v303
        %v305 = vlaneseq
        %v306 = vshrl.u32 %v305, 7
        %v307 = vsub.s32 %v304, %v306
        %v308 = vrot.slane %v301, %v307
        %v310 = vadd.f32 %v239, %v308
        %v311 = vlaneseq
        %vm312 = vcmp.ge.s32.totalorder %v311, 0
        %vm313 = vcmp.lt.s32.totalorder %v311, 256
        %vm314 = vmand %vm312, %vm313
        %315 = vst.msk [vmem:[#allocation2] sm:$0x3] %vm314, %v277
        %316 = vst.msk [vmem:[#allocation3] sm:$0x3] %vm314, %v310
        // Predicated region
        $region49: #{tpu_custom_call.1} parent=31 // pred_check
          %p317 = pneg %p228
        $region50: #{tpu_custom_call.1} parent=31 // pred_check_branch
          %319 = sbr.rel (%p317) target = $region52
        $region51: #{tpu_custom_call.1} parent=31 // pred_region
          %v320 = vld [vmem:[#allocation2] sm:$0x3]
          %v321 = vld [vmem:[#allocation3] sm:$0x3]
          %v322 = vmul.f32 %v321, 0.25
          %v324 = vlaneseq
          %v325 = vshrl.u32 %v324, 7
          %v326 = vsub.s32 0, %v325
          %v327 = vrot.slane %v320, %v326
          %v328 = vlaneseq
          %v329 = vshrl.u32 %v328, 7
          %v330 = vsub.s32 1, %v329
          %v331 = vrot.slane %v320, %v330
          %332 = vrot.lane.b32.xlu0 %v327, 48
          %v333 = vpop.permute.xlu0 %332
          %334 = vrot.lane.b32.xlu0 %v331, 48
          %v335 = vpop.permute.xlu0 %334
          %vm336 = vcmask 392192
          %v337 = vsel %vm336, %v333, %v335
          %v340 = vsel %vm336, 0.0, %v333
          %341 = vrot.lane.b32.xlu0 %v327, 32
          %v342 = vpop.permute.xlu0 %341
          %343 = vrot.lane.b32.xlu0 %v331, 32
          %v344 = vpop.permute.xlu0 %343
          %vm345 = vcmask 261120
          %v346 = vsel %vm345, %v342, %v344
          %v349 = vsel %vm345, 0.0, %v342
          %350 = vrot.lane.b32.xlu0 %v327, 16
          %v351 = vpop.permute.xlu0 %350
          %352 = vrot.lane.b32.xlu0 %v331, 16
          %v353 = vpop.permute.xlu0 %352
          %vm354 = vcmask 130048
          %v355 = vsel %vm354, %v351, %v353
          %v358 = vsel %vm354, 0.0, %v351
          %359 = vrot.lane.b32.xlu0 %v327, 112
          %v360 = vpop.permute.xlu0 %359
          %361 = vrot.lane.b32.xlu0 %v331, 112
          %v362 = vpop.permute.xlu0 %361
          %vm363 = vcmask 916480
          %v364 = vsel %vm363, %v360, %v362
          %v367 = vsel %vm363, %v362, 0.0
          %368 = vrot.lane.b32.xlu0 %v327, 96
          %v369 = vpop.permute.xlu0 %368
          %370 = vrot.lane.b32.xlu0 %v331, 96
          %v371 = vpop.permute.xlu0 %370
          %vm372 = vcmask 785408
          %v373 = vsel %vm372, %v369, %v371
          %v376 = vsel %vm372, %v371, 0.0
          %377 = vrot.lane.b32.xlu0 %v327, 80
          %v378 = vpop.permute.xlu0 %377
          %379 = vrot.lane.b32.xlu0 %v331, 80
          %v380 = vpop.permute.xlu0 %379
          %vm381 = vcmask 654336
          %v382 = vsel %vm381, %v378, %v380
          %v385 = vsel %vm381, %v380, 0.0
          %v387 = vlaneseq
          %v388 = vshrl.u32 %v387, 7
          %v389 = vsub.s32 0, %v388
          %v390 = vrot.slane %v322, %v389
          %v391 = vlaneseq
          %v392 = vshrl.u32 %v391, 7
          %v393 = vsub.s32 1, %v392
          %v394 = vrot.slane %v322, %v393
          %395 = vrot.lane.b32.xlu0 %v390, 48
          %v396 = vpop.permute.xlu0 %395
          %397 = vrot.lane.b32.xlu0 %v394, 48
          %v398 = vpop.permute.xlu0 %397
          %v399 = vsel %vm336, %v396, %v398
          %v402 = vsel %vm336, 0.0, %v396
          %403 = vrot.lane.b32.xlu0 %v390, 32
          %v404 = vpop.permute.xlu0 %403
          %405 = vrot.lane.b32.xlu0 %v394, 32
          %v406 = vpop.permute.xlu0 %405
          %v407 = vsel %vm345, %v404, %v406
          %v410 = vsel %vm345, 0.0, %v404
          %411 = vrot.lane.b32.xlu0 %v390, 16
          %v412 = vpop.permute.xlu0 %411
          %413 = vrot.lane.b32.xlu0 %v394, 16
          %v414 = vpop.permute.xlu0 %413
          %v415 = vsel %vm354, %v412, %v414
          %v418 = vsel %vm354, 0.0, %v412
          %419 = vrot.lane.b32.xlu0 %v390, 112
          %v420 = vpop.permute.xlu0 %419
          %421 = vrot.lane.b32.xlu0 %v394, 112
          %v422 = vpop.permute.xlu0 %421
          %v423 = vsel %vm363, %v420, %v422
          %v426 = vsel %vm363, %v422, 0.0
          %427 = vrot.lane.b32.xlu0 %v390, 96
          %v428 = vpop.permute.xlu0 %427
          %429 = vrot.lane.b32.xlu0 %v394, 96
          %v430 = vpop.permute.xlu0 %429
          %v431 = vsel %vm372, %v428, %v430
          %v434 = vsel %vm372, %v430, 0.0
          %435 = vrot.lane.b32.xlu0 %v390, 80
          %v436 = vpop.permute.xlu0 %435
          %437 = vrot.lane.b32.xlu0 %v394, 80
          %v438 = vpop.permute.xlu0 %437
          %v439 = vsel %vm381, %v436, %v438
          %v442 = vsel %vm381, %v438, 0.0
          %s443 = sld [smem:[#allocation4 + $0x62]]
          %s444 = sld [smem:[#allocation4]]
          %v445 = vstv %s444
          %v446 = vmul.f32 %v445, %v340
          %v447 = vmul.f32 %v445, %v337
          %v448 = vadd.f32 %v446, 0.0
          %v449 = vadd.f32 %v447, 0.0
          %s450 = sld [smem:[#allocation4 + $0x31]]
          %v451 = vstv %s450
          %v452 = vmul.f32 %v451, %v402
          %v453 = vmul.f32 %v451, %v399
          %v454 = vadd.f32 %v448, %v452
          %v455 = vadd.f32 %v449, %v453
          %s456 = sld [smem:[#allocation4 + $0x7]]
          %v457 = vstv %s456
          %v458 = vmul.f32 %v457, %v349
          %v459 = vmul.f32 %v457, %v346
          %v460 = vadd.f32 %v454, %v458
          %v461 = vadd.f32 %v455, %v459
          %s462 = sld [smem:[#allocation4 + $0x38]]
          %v463 = vstv %s462
          %v464 = vmul.f32 %v463, %v410
          %v465 = vmul.f32 %v463, %v407
          %v466 = vadd.f32 %v460, %v464
          %v467 = vadd.f32 %v461, %v465
          %s468 = sld [smem:[#allocation4 + $0xe]]
          %v469 = vstv %s468
          %v470 = vmul.f32 %v469, %v358
          %v471 = vmul.f32 %v469, %v355
          %v472 = vadd.f32 %v466, %v470
          %v473 = vadd.f32 %v467, %v471
          %s474 = sld [smem:[#allocation4 + $0x3f]]
          %v475 = vstv %s474
          %v476 = vmul.f32 %v475, %v418
          %v477 = vmul.f32 %v475, %v415
          %v478 = vadd.f32 %v472, %v476
          %v479 = vadd.f32 %v473, %v477
          %s480 = sld [smem:[#allocation4 + $0x15]]
          %v481 = vstv %s480
          %v482 = vmul.f32 %v481, %v320
          %v484 = vlaneseq
          %v485 = vshrl.u32 %v484, 7
          %v486 = vsub.s32 0, %v485
          %v487 = vrot.slane %v482, %v486
          %v488 = vlaneseq
          %v489 = vshrl.u32 %v488, 7
          %v490 = vsub.s32 1, %v489
          %v491 = vrot.slane %v482, %v490
          %v494 = vadd.f32 %v478, %v487
          %v495 = vadd.f32 %v479, %v491
          %s496 = sld [smem:[#allocation4 + $0x46]]
          %v497 = vstv %s496
          %v498 = vmul.f32 %v497, %v322
          %v500 = vlaneseq
          %v501 = vshrl.u32 %v500, 7
          %v502 = vsub.s32 0, %v501
          %v503 = vrot.slane %v498, %v502
          %v504 = vlaneseq
          %v505 = vshrl.u32 %v504, 7
          %v506 = vsub.s32 1, %v505
          %v507 = vrot.slane %v498, %v506
          %v510 = vadd.f32 %v494, %v503
          %v511 = vadd.f32 %v495, %v507
          %s512 = sld [smem:[#allocation4 + $0x1c]]
          %v513 = vstv %s512
          %v514 = vmul.f32 %v513, %v364
          %v515 = vmul.f32 %v513, %v367
          %v516 = vadd.f32 %v510, %v514
          %v517 = vadd.f32 %v511, %v515
          %s518 = sld [smem:[#allocation4 + $0x4d]]
          %v519 = vstv %s518
          %v520 = vmul.f32 %v519, %v423
          %v521 = vmul.f32 %v519, %v426
          %v522 = vadd.f32 %v516, %v520
          %v523 = vadd.f32 %v517, %v521
          %s524 = sld [smem:[#allocation4 + $0x23]]
          %v525 = vstv %s524
          %v526 = vmul.f32 %v525, %v373
          %v527 = vmul.f32 %v525, %v376
          %v528 = vadd.f32 %v522, %v526
          %v529 = vadd.f32 %v523, %v527
          %s530 = sld [smem:[#allocation4 + $0x54]]
          %v531 = vstv %s530
          %v532 = vmul.f32 %v531, %v431
          %v533 = vmul.f32 %v531, %v434
          %v534 = vadd.f32 %v528, %v532
          %v535 = vadd.f32 %v529, %v533
          %s536 = sld [smem:[#allocation4 + $0x2a]]
          %v537 = vstv %s536
          %v538 = vmul.f32 %v537, %v382
          %v539 = vmul.f32 %v537, %v385
          %v540 = vadd.f32 %v534, %v538
          %v541 = vadd.f32 %v535, %v539
          %s542 = sld [smem:[#allocation4 + $0x5b]]
          %v543 = vstv %s542
          %v544 = vmul.f32 %v543, %v439
          %v545 = vmul.f32 %v543, %v442
          %v546 = vadd.f32 %v540, %v544
          %v547 = vadd.f32 %v541, %v545
          %550 = vrot.lane.b32.xlu0 %v546, 3
          %v551 = vpop.permute.xlu0 %550
          %552 = vrot.lane.b32.xlu0 %v547, 3
          %v553 = vpop.permute.xlu0 %552
          %vm554 = vcmask 23552
          %v555 = vsel %vm554, %v551, %v553
          %v558 = vsel %vm554, 0.0, %v551
          %v559 = vld [vmem:[#allocation8] ss:$8 sm:$0x3]
          %v561 = vlaneseq
          %v562 = vshrl.u32 %v561, 7
          %v563 = vsub.s32 0, %v562
          %v564 = vrot.slane %v559, %v563
          %v565 = vlaneseq
          %v566 = vshrl.u32 %v565, 7
          %v567 = vsub.s32 1, %v566
          %v568 = vrot.slane %v559, %v567
          %v571 = vmul.f32 %v558, %v564
          %v572 = vmul.f32 %v555, %v568
          %v573 = vadd.f32 %v571, 0.0
          %v574 = vadd.f32 %v572, 0.0
          %s575 = sld [smem:[#allocation4 + $0x1]]
          %v576 = vstv %s575
          %v577 = vmul.f32 %v576, %v340
          %v578 = vmul.f32 %v576, %v337
          %v579 = vadd.f32 %v577, 0.0
          %v580 = vadd.f32 %v578, 0.0
          %s581 = sld [smem:[#allocation4 + $0x32]]
          %v582 = vstv %s581
          %v583 = vmul.f32 %v582, %v402
          %v584 = vmul.f32 %v582, %v399
          %v585 = vadd.f32 %v579, %v583
          %v586 = vadd.f32 %v580, %v584
          %s587 = sld [smem:[#allocation4 + $0x8]]
          %v588 = vstv %s587
          %v589 = vmul.f32 %v588, %v349
          %v590 = vmul.f32 %v588, %v346
          %v591 = vadd.f32 %v585, %v589
          %v592 = vadd.f32 %v586, %v590
          %s593 = sld [smem:[#allocation4 + $0x39]]
          %v594 = vstv %s593
          %v595 = vmul.f32 %v594, %v410
          %v596 = vmul.f32 %v594, %v407
          %v597 = vadd.f32 %v591, %v595
          %v598 = vadd.f32 %v592, %v596
          %s599 = sld [smem:[#allocation4 + $0xf]]
          %v600 = vstv %s599
          %v601 = vmul.f32 %v600, %v358
          %v602 = vmul.f32 %v600, %v355
          %v603 = vadd.f32 %v597, %v601
          %v604 = vadd.f32 %v598, %v602
          %s605 = sld [smem:[#allocation4 + $0x40]]
          %v606 = vstv %s605
          %v607 = vmul.f32 %v606, %v418
          %v608 = vmul.f32 %v606, %v415
          %v609 = vadd.f32 %v603, %v607
          %v610 = vadd.f32 %v604, %v608
          %s611 = sld [smem:[#allocation4 + $0x16]]
          %v612 = vstv %s611
          %v613 = vmul.f32 %v612, %v320
          %v615 = vlaneseq
          %v616 = vshrl.u32 %v615, 7
          %v617 = vsub.s32 0, %v616
          %v618 = vrot.slane %v613, %v617
          %v619 = vlaneseq
          %v620 = vshrl.u32 %v619, 7
          %v621 = vsub.s32 1, %v620
          %v622 = vrot.slane %v613, %v621
          %v625 = vadd.f32 %v609, %v618
          %v626 = vadd.f32 %v610, %v622
          %s627 = sld [smem:[#allocation4 + $0x47]]
          %v628 = vstv %s627
          %v629 = vmul.f32 %v628, %v322
          %v631 = vlaneseq
          %v632 = vshrl.u32 %v631, 7
          %v633 = vsub.s32 0, %v632
          %v634 = vrot.slane %v629, %v633
          %v635 = vlaneseq
          %v636 = vshrl.u32 %v635, 7
          %v637 = vsub.s32 1, %v636
          %v638 = vrot.slane %v629, %v637
          %v641 = vadd.f32 %v625, %v634
          %v642 = vadd.f32 %v626, %v638
          %s643 = sld [smem:[#allocation4 + $0x1d]]
          %v644 = vstv %s643
          %v645 = vmul.f32 %v644, %v364
          %v646 = vmul.f32 %v644, %v367
          %v647 = vadd.f32 %v641, %v645
          %v648 = vadd.f32 %v642, %v646
          %s649 = sld [smem:[#allocation4 + $0x4e]]
          %v650 = vstv %s649
          %v651 = vmul.f32 %v650, %v423
          %v652 = vmul.f32 %v650, %v426
          %v653 = vadd.f32 %v647, %v651
          %v654 = vadd.f32 %v648, %v652
          %s655 = sld [smem:[#allocation4 + $0x24]]
          %v656 = vstv %s655
          %v657 = vmul.f32 %v656, %v373
          %v658 = vmul.f32 %v656, %v376
          %v659 = vadd.f32 %v653, %v657
          %v660 = vadd.f32 %v654, %v658
          %s661 = sld [smem:[#allocation4 + $0x55]]
          %v662 = vstv %s661
          %v663 = vmul.f32 %v662, %v431
          %v664 = vmul.f32 %v662, %v434
          %v665 = vadd.f32 %v659, %v663
          %v666 = vadd.f32 %v660, %v664
          %s667 = sld [smem:[#allocation4 + $0x2b]]
          %v668 = vstv %s667
          %v669 = vmul.f32 %v668, %v382
          %v670 = vmul.f32 %v668, %v385
          %v671 = vadd.f32 %v665, %v669
          %v672 = vadd.f32 %v666, %v670
          %s673 = sld [smem:[#allocation4 + $0x5c]]
          %v674 = vstv %s673
          %v675 = vmul.f32 %v674, %v439
          %v676 = vmul.f32 %v674, %v442
          %v677 = vadd.f32 %v671, %v675
          %v678 = vadd.f32 %v672, %v676
          %681 = vrot.lane.b32.xlu0 %v677, 2
          %v682 = vpop.permute.xlu0 %681
          %683 = vrot.lane.b32.xlu0 %v678, 2
          %v684 = vpop.permute.xlu0 %683
          %vm685 = vcmask 15360
          %v686 = vsel %vm685, %v682, %v684
          %v689 = vsel %vm685, 0.0, %v682
          %s690 = scalar_lea.vmem [#allocation8], 1
          %v691 = vld [vmem:[%s690] ss:$8 sm:$0x3]
          %v693 = vlaneseq
          %v694 = vshrl.u32 %v693, 7
          %v695 = vsub.s32 0, %v694
          %v696 = vrot.slane %v691, %v695
          %v697 = vlaneseq
          %v698 = vshrl.u32 %v697, 7
          %v699 = vsub.s32 1, %v698
          %v700 = vrot.slane %v691, %v699
          %v703 = vmul.f32 %v689, %v696
          %v704 = vmul.f32 %v686, %v700
          %v705 = vadd.f32 %v573, %v703
          %v706 = vadd.f32 %v574, %v704
          %s707 = sld [smem:[#allocation4 + $0x2]]
          %v708 = vstv %s707
          %v709 = vmul.f32 %v708, %v340
          %v710 = vmul.f32 %v708, %v337
          %v711 = vadd.f32 %v709, 0.0
          %v712 = vadd.f32 %v710, 0.0
          %s713 = sld [smem:[#allocation4 + $0x33]]
          %v714 = vstv %s713
          %v715 = vmul.f32 %v714, %v402
          %v716 = vmul.f32 %v714, %v399
          %v717 = vadd.f32 %v711, %v715
          %v718 = vadd.f32 %v712, %v716
          %s719 = sld [smem:[#allocation4 + $0x9]]
          %v720 = vstv %s719
          %v721 = vmul.f32 %v720, %v349
          %v722 = vmul.f32 %v720, %v346
          %v723 = vadd.f32 %v717, %v721
          %v724 = vadd.f32 %v718, %v722
          %s725 = sld [smem:[#allocation4 + $0x3a]]
          %v726 = vstv %s725
          %v727 = vmul.f32 %v726, %v410
          %v728 = vmul.f32 %v726, %v407
          %v729 = vadd.f32 %v723, %v727
          %v730 = vadd.f32 %v724, %v728
          %s731 = sld [smem:[#allocation4 + $0x10]]
          %v732 = vstv %s731
          %v733 = vmul.f32 %v732, %v358
          %v734 = vmul.f32 %v732, %v355
          %v735 = vadd.f32 %v729, %v733
          %v736 = vadd.f32 %v730, %v734
          %s737 = sld [smem:[#allocation4 + $0x41]]
          %v738 = vstv %s737
          %v739 = vmul.f32 %v738, %v418
          %v740 = vmul.f32 %v738, %v415
          %v741 = vadd.f32 %v735, %v739
          %v742 = vadd.f32 %v736, %v740
          %s743 = sld [smem:[#allocation4 + $0x17]]
          %v744 = vstv %s743
          %v745 = vmul.f32 %v744, %v320
          %v747 = vlaneseq
          %v748 = vshrl.u32 %v747, 7
          %v749 = vsub.s32 0, %v748
          %v750 = vrot.slane %v745, %v749
          %v751 = vlaneseq
          %v752 = vshrl.u32 %v751, 7
          %v753 = vsub.s32 1, %v752
          %v754 = vrot.slane %v745, %v753
          %v757 = vadd.f32 %v741, %v750
          %v758 = vadd.f32 %v742, %v754
          %s759 = sld [smem:[#allocation4 + $0x48]]
          %v760 = vstv %s759
          %v761 = vmul.f32 %v760, %v322
          %v763 = vlaneseq
          %v764 = vshrl.u32 %v763, 7
          %v765 = vsub.s32 0, %v764
          %v766 = vrot.slane %v761, %v765
          %v767 = vlaneseq
          %v768 = vshrl.u32 %v767, 7
          %v769 = vsub.s32 1, %v768
          %v770 = vrot.slane %v761, %v769
          %v773 = vadd.f32 %v757, %v766
          %v774 = vadd.f32 %v758, %v770
          %s775 = sld [smem:[#allocation4 + $0x1e]]
          %v776 = vstv %s775
          %v777 = vmul.f32 %v776, %v364
          %v778 = vmul.f32 %v776, %v367
          %v779 = vadd.f32 %v773, %v777
          %v780 = vadd.f32 %v774, %v778
          %s781 = sld [smem:[#allocation4 + $0x4f]]
          %v782 = vstv %s781
          %v783 = vmul.f32 %v782, %v423
          %v784 = vmul.f32 %v782, %v426
          %v785 = vadd.f32 %v779, %v783
          %v786 = vadd.f32 %v780, %v784
          %s787 = sld [smem:[#allocation4 + $0x25]]
          %v788 = vstv %s787
          %v789 = vmul.f32 %v788, %v373
          %v790 = vmul.f32 %v788, %v376
          %v791 = vadd.f32 %v785, %v789
          %v792 = vadd.f32 %v786, %v790
          %s793 = sld [smem:[#allocation4 + $0x56]]
          %v794 = vstv %s793
          %v795 = vmul.f32 %v794, %v431
          %v796 = vmul.f32 %v794, %v434
          %v797 = vadd.f32 %v791, %v795
          %v798 = vadd.f32 %v792, %v796
          %s799 = sld [smem:[#allocation4 + $0x2c]]
          %v800 = vstv %s799
          %v801 = vmul.f32 %v800, %v382
          %v802 = vmul.f32 %v800, %v385
          %v803 = vadd.f32 %v797, %v801
          %v804 = vadd.f32 %v798, %v802
          %s805 = sld [smem:[#allocation4 + $0x5d]]
          %v806 = vstv %s805
          %v807 = vmul.f32 %v806, %v439
          %v808 = vmul.f32 %v806, %v442
          %v809 = vadd.f32 %v803, %v807
          %v810 = vadd.f32 %v804, %v808
          %813 = vrot.lane.b32.xlu0 %v809, 1
          %v814 = vpop.permute.xlu0 %813
          %815 = vrot.lane.b32.xlu0 %v810, 1
          %v816 = vpop.permute.xlu0 %815
          %vm817 = vcmask 7168
          %v818 = vsel %vm817, %v814, %v816
          %v821 = vsel %vm817, 0.0, %v814
          %s822 = scalar_lea.vmem [#allocation8], 2
          %v823 = vld [vmem:[%s822] ss:$8 sm:$0x3]
          %v825 = vlaneseq
          %v826 = vshrl.u32 %v825, 7
          %v827 = vsub.s32 0, %v826
          %v828 = vrot.slane %v823, %v827
          %v829 = vlaneseq
          %v830 = vshrl.u32 %v829, 7
          %v831 = vsub.s32 1, %v830
          %v832 = vrot.slane %v823, %v831
          %v835 = vmul.f32 %v821, %v828
          %v836 = vmul.f32 %v818, %v832
          %v837 = vadd.f32 %v705, %v835
          %v838 = vadd.f32 %v706, %v836
          %s839 = sld [smem:[#allocation4 + $0x3]]
          %v840 = vstv %s839
          %v841 = vmul.f32 %v840, %v340
          %v842 = vmul.f32 %v840, %v337
          %v843 = vadd.f32 %v841, 0.0
          %v844 = vadd.f32 %v842, 0.0
          %s845 = sld [smem:[#allocation4 + $0x34]]
          %v846 = vstv %s845
          %v847 = vmul.f32 %v846, %v402
          %v848 = vmul.f32 %v846, %v399
          %v849 = vadd.f32 %v843, %v847
          %v850 = vadd.f32 %v844, %v848
          %s851 = sld [smem:[#allocation4 + $0xa]]
          %v852 = vstv %s851
          %v853 = vmul.f32 %v852, %v349
          %v854 = vmul.f32 %v852, %v346
          %v855 = vadd.f32 %v849, %v853
          %v856 = vadd.f32 %v850, %v854
          %s857 = sld [smem:[#allocation4 + $0x3b]]
          %v858 = vstv %s857
          %v859 = vmul.f32 %v858, %v410
          %v860 = vmul.f32 %v858, %v407
          %v861 = vadd.f32 %v855, %v859
          %v862 = vadd.f32 %v856, %v860
          %s863 = sld [smem:[#allocation4 + $0x11]]
          %v864 = vstv %s863
          %v865 = vmul.f32 %v864, %v358
          %v866 = vmul.f32 %v864, %v355
          %v867 = vadd.f32 %v861, %v865
          %v868 = vadd.f32 %v862, %v866
          %s869 = sld [smem:[#allocation4 + $0x42]]
          %v870 = vstv %s869
          %v871 = vmul.f32 %v870, %v418
          %v872 = vmul.f32 %v870, %v415
          %v873 = vadd.f32 %v867, %v871
          %v874 = vadd.f32 %v868, %v872
          %s875 = sld [smem:[#allocation4 + $0x18]]
          %v876 = vstv %s875
          %v877 = vmul.f32 %v876, %v320
          %v879 = vlaneseq
          %v880 = vshrl.u32 %v879, 7
          %v881 = vsub.s32 0, %v880
          %v882 = vrot.slane %v877, %v881
          %v883 = vlaneseq
          %v884 = vshrl.u32 %v883, 7
          %v885 = vsub.s32 1, %v884
          %v886 = vrot.slane %v877, %v885
          %v889 = vadd.f32 %v873, %v882
          %v890 = vadd.f32 %v874, %v886
          %s891 = sld [smem:[#allocation4 + $0x49]]
          %v892 = vstv %s891
          %v893 = vmul.f32 %v892, %v322
          %v895 = vlaneseq
          %v896 = vshrl.u32 %v895, 7
          %v897 = vsub.s32 0, %v896
          %v898 = vrot.slane %v893, %v897
          %v899 = vlaneseq
          %v900 = vshrl.u32 %v899, 7
          %v901 = vsub.s32 1, %v900
          %v902 = vrot.slane %v893, %v901
          %v905 = vadd.f32 %v889, %v898
          %v906 = vadd.f32 %v890, %v902
          %s907 = sld [smem:[#allocation4 + $0x1f]]
          %v908 = vstv %s907
          %v909 = vmul.f32 %v908, %v364
          %v910 = vmul.f32 %v908, %v367
          %v911 = vadd.f32 %v905, %v909
          %v912 = vadd.f32 %v906, %v910
          %s913 = sld [smem:[#allocation4 + $0x50]]
          %v914 = vstv %s913
          %v915 = vmul.f32 %v914, %v423
          %v916 = vmul.f32 %v914, %v426
          %v917 = vadd.f32 %v911, %v915
          %v918 = vadd.f32 %v912, %v916
          %s919 = sld [smem:[#allocation4 + $0x26]]
          %v920 = vstv %s919
          %v921 = vmul.f32 %v920, %v373
          %v922 = vmul.f32 %v920, %v376
          %v923 = vadd.f32 %v917, %v921
          %v924 = vadd.f32 %v918, %v922
          %s925 = sld [smem:[#allocation4 + $0x57]]
          %v926 = vstv %s925
          %v927 = vmul.f32 %v926, %v431
          %v928 = vmul.f32 %v926, %v434
          %v929 = vadd.f32 %v923, %v927
          %v930 = vadd.f32 %v924, %v928
          %s931 = sld [smem:[#allocation4 + $0x2d]]
          %v932 = vstv %s931
          %v933 = vmul.f32 %v932, %v382
          %v934 = vmul.f32 %v932, %v385
          %v935 = vadd.f32 %v929, %v933
          %v936 = vadd.f32 %v930, %v934
          %s937 = sld [smem:[#allocation4 + $0x5e]]
          %v938 = vstv %s937
          %v939 = vmul.f32 %v938, %v439
          %v940 = vmul.f32 %v938, %v442
          %v941 = vadd.f32 %v935, %v939
          %v942 = vadd.f32 %v936, %v940
          %v943 = vadd.f32 %v837, %v941
          %v944 = vadd.f32 %v838, %v942
          %s945 = sld [smem:[#allocation4 + $0x4]]
          %v946 = vstv %s945
          %v947 = vmul.f32 %v946, %v340
          %v948 = vmul.f32 %v946, %v337
          %v949 = vadd.f32 %v947, 0.0
          %v950 = vadd.f32 %v948, 0.0
          %s951 = sld [smem:[#allocation4 + $0x35]]
          %v952 = vstv %s951
          %v953 = vmul.f32 %v952, %v402
          %v954 = vmul.f32 %v952, %v399
          %v955 = vadd.f32 %v949, %v953
          %v956 = vadd.f32 %v950, %v954
          %s957 = sld [smem:[#allocation4 + $0xb]]
          %v958 = vstv %s957
          %v959 = vmul.f32 %v958, %v349
          %v960 = vmul.f32 %v958, %v346
          %v961 = vadd.f32 %v955, %v959
          %v962 = vadd.f32 %v956, %v960
          %s963 = sld [smem:[#allocation4 + $0x3c]]
          %v964 = vstv %s963
          %v965 = vmul.f32 %v964, %v410
          %v966 = vmul.f32 %v964, %v407
          %v967 = vadd.f32 %v961, %v965
          %v968 = vadd.f32 %v962, %v966
          %s969 = sld [smem:[#allocation4 + $0x12]]
          %v970 = vstv %s969
          %v971 = vmul.f32 %v970, %v358
          %v972 = vmul.f32 %v970, %v355
          %v973 = vadd.f32 %v967, %v971
          %v974 = vadd.f32 %v968, %v972
          %s975 = sld [smem:[#allocation4 + $0x43]]
          %v976 = vstv %s975
          %v977 = vmul.f32 %v976, %v418
          %v978 = vmul.f32 %v976, %v415
          %v979 = vadd.f32 %v973, %v977
          %v980 = vadd.f32 %v974, %v978
          %s981 = sld [smem:[#allocation4 + $0x19]]
          %v982 = vstv %s981
          %v983 = vmul.f32 %v982, %v320
          %v985 = vlaneseq
          %v986 = vshrl.u32 %v985, 7
          %v987 = vsub.s32 0, %v986
          %v988 = vrot.slane %v983, %v987
          %v989 = vlaneseq
          %v990 = vshrl.u32 %v989, 7
          %v991 = vsub.s32 1, %v990
          %v992 = vrot.slane %v983, %v991
          %v995 = vadd.f32 %v979, %v988
          %v996 = vadd.f32 %v980, %v992
          %s997 = sld [smem:[#allocation4 + $0x4a]]
          %v998 = vstv %s997
          %v999 = vmul.f32 %v998, %v322
          %v1001 = vlaneseq
          %v1002 = vshrl.u32 %v1001, 7
          %v1003 = vsub.s32 0, %v1002
          %v1004 = vrot.slane %v999, %v1003
          %v1005 = vlaneseq
          %v1006 = vshrl.u32 %v1005, 7
          %v1007 = vsub.s32 1, %v1006
          %v1008 = vrot.slane %v999, %v1007
          %v1011 = vadd.f32 %v995, %v1004
          %v1012 = vadd.f32 %v996, %v1008
          %s1013 = sld [smem:[#allocation4 + $0x20]]
          %v1014 = vstv %s1013
          %v1015 = vmul.f32 %v1014, %v364
          %v1016 = vmul.f32 %v1014, %v367
          %v1017 = vadd.f32 %v1011, %v1015
          %v1018 = vadd.f32 %v1012, %v1016
          %s1019 = sld [smem:[#allocation4 + $0x51]]
          %v1020 = vstv %s1019
          %v1021 = vmul.f32 %v1020, %v423
          %v1022 = vmul.f32 %v1020, %v426
          %v1023 = vadd.f32 %v1017, %v1021
          %v1024 = vadd.f32 %v1018, %v1022
          %s1025 = sld [smem:[#allocation4 + $0x27]]
          %v1026 = vstv %s1025
          %v1027 = vmul.f32 %v1026, %v373
          %v1028 = vmul.f32 %v1026, %v376
          %v1029 = vadd.f32 %v1023, %v1027
          %v1030 = vadd.f32 %v1024, %v1028
          %s1031 = sld [smem:[#allocation4 + $0x58]]
          %v1032 = vstv %s1031
          %v1033 = vmul.f32 %v1032, %v431
          %v1034 = vmul.f32 %v1032, %v434
          %v1035 = vadd.f32 %v1029, %v1033
          %v1036 = vadd.f32 %v1030, %v1034
          %s1037 = sld [smem:[#allocation4 + $0x2e]]
          %v1038 = vstv %s1037
          %v1039 = vmul.f32 %v1038, %v382
          %v1040 = vmul.f32 %v1038, %v385
          %v1041 = vadd.f32 %v1035, %v1039
          %v1042 = vadd.f32 %v1036, %v1040
          %s1043 = sld [smem:[#allocation4 + $0x5f]]
          %v1044 = vstv %s1043
          %v1045 = vmul.f32 %v1044, %v439
          %v1046 = vmul.f32 %v1044, %v442
          %v1047 = vadd.f32 %v1041, %v1045
          %v1048 = vadd.f32 %v1042, %v1046
          %1051 = vrot.lane.b32.xlu0 %v1047, 127
          %v1052 = vpop.permute.xlu0 %1051
          %1053 = vrot.lane.b32.xlu0 %v1048, 127
          %v1054 = vpop.permute.xlu0 %1053
          %vm1055 = vcmask 1039360
          %v1056 = vsel %vm1055, %v1052, %v1054
          %v1059 = vsel %vm1055, %v1054, 0.0
          %s1060 = scalar_lea.vmem [#allocation8], 4
          %v1061 = vld [vmem:[%s1060] ss:$8 sm:$0x3]
          %v1063 = vlaneseq
          %v1064 = vshrl.u32 %v1063, 7
          %v1065 = vsub.s32 0, %v1064
          %v1066 = vrot.slane %v1061, %v1065
          %v1067 = vlaneseq
          %v1068 = vshrl.u32 %v1067, 7
          %v1069 = vsub.s32 1, %v1068
          %v1070 = vrot.slane %v1061, %v1069
          %v1073 = vmul.f32 %v1056, %v1066
          %v1074 = vmul.f32 %v1059, %v1070
          %v1075 = vadd.f32 %v943, %v1073
          %v1076 = vadd.f32 %v944, %v1074
          %s1077 = sld [smem:[#allocation4 + $0x5]]
          %v1078 = vstv %s1077
          %v1079 = vmul.f32 %v1078, %v340
          %v1080 = vmul.f32 %v1078, %v337
          %v1081 = vadd.f32 %v1079, 0.0
          %v1082 = vadd.f32 %v1080, 0.0
          %s1083 = sld [smem:[#allocation4 + $0x36]]
          %v1084 = vstv %s1083
          %v1085 = vmul.f32 %v1084, %v402
          %v1086 = vmul.f32 %v1084, %v399
          %v1087 = vadd.f32 %v1081, %v1085
          %v1088 = vadd.f32 %v1082, %v1086
          %s1089 = sld [smem:[#allocation4 + $0xc]]
          %v1090 = vstv %s1089
          %v1091 = vmul.f32 %v1090, %v349
          %v1092 = vmul.f32 %v1090, %v346
          %v1093 = vadd.f32 %v1087, %v1091
          %v1094 = vadd.f32 %v1088, %v1092
          %s1095 = sld [smem:[#allocation4 + $0x3d]]
          %v1096 = vstv %s1095
          %v1097 = vmul.f32 %v1096, %v410
          %v1098 = vmul.f32 %v1096, %v407
          %v1099 = vadd.f32 %v1093, %v1097
          %v1100 = vadd.f32 %v1094, %v1098
          %s1101 = sld [smem:[#allocation4 + $0x13]]
          %v1102 = vstv %s1101
          %v1103 = vmul.f32 %v1102, %v358
          %v1104 = vmul.f32 %v1102, %v355
          %v1105 = vadd.f32 %v1099, %v1103
          %v1106 = vadd.f32 %v1100, %v1104
          %s1107 = sld [smem:[#allocation4 + $0x44]]
          %v1108 = vstv %s1107
          %v1109 = vmul.f32 %v1108, %v418
          %v1110 = vmul.f32 %v1108, %v415
          %v1111 = vadd.f32 %v1105, %v1109
          %v1112 = vadd.f32 %v1106, %v1110
          %s1113 = sld [smem:[#allocation4 + $0x1a]]
          %v1114 = vstv %s1113
          %v1115 = vmul.f32 %v1114, %v320
          %v1117 = vlaneseq
          %v1118 = vshrl.u32 %v1117, 7
          %v1119 = vsub.s32 0, %v1118
          %v1120 = vrot.slane %v1115, %v1119
          %v1121 = vlaneseq
          %v1122 = vshrl.u32 %v1121, 7
          %v1123 = vsub.s32 1, %v1122
          %v1124 = vrot.slane %v1115, %v1123
          %v1127 = vadd.f32 %v1111, %v1120
          %v1128 = vadd.f32 %v1112, %v1124
          %s1129 = sld [smem:[#allocation4 + $0x4b]]
          %v1130 = vstv %s1129
          %v1131 = vmul.f32 %v1130, %v322
          %v1133 = vlaneseq
          %v1134 = vshrl.u32 %v1133, 7
          %v1135 = vsub.s32 0, %v1134
          %v1136 = vrot.slane %v1131, %v1135
          %v1137 = vlaneseq
          %v1138 = vshrl.u32 %v1137, 7
          %v1139 = vsub.s32 1, %v1138
          %v1140 = vrot.slane %v1131, %v1139
          %v1143 = vadd.f32 %v1127, %v1136
          %v1144 = vadd.f32 %v1128, %v1140
          %s1145 = sld [smem:[#allocation4 + $0x21]]
          %v1146 = vstv %s1145
          %v1147 = vmul.f32 %v1146, %v364
          %v1148 = vmul.f32 %v1146, %v367
          %v1149 = vadd.f32 %v1143, %v1147
          %v1150 = vadd.f32 %v1144, %v1148
          %s1151 = sld [smem:[#allocation4 + $0x52]]
          %v1152 = vstv %s1151
          %v1153 = vmul.f32 %v1152, %v423
          %v1154 = vmul.f32 %v1152, %v426
          %v1155 = vadd.f32 %v1149, %v1153
          %v1156 = vadd.f32 %v1150, %v1154
          %s1157 = sld [smem:[#allocation4 + $0x28]]
          %v1158 = vstv %s1157
          %v1159 = vmul.f32 %v1158, %v373
          %v1160 = vmul.f32 %v1158, %v376
          %v1161 = vadd.f32 %v1155, %v1159
          %v1162 = vadd.f32 %v1156, %v1160
          %s1163 = sld [smem:[#allocation4 + $0x59]]
          %v1164 = vstv %s1163
          %v1165 = vmul.f32 %v1164, %v431
          %v1166 = vmul.f32 %v1164, %v434
          %v1167 = vadd.f32 %v1161, %v1165
          %v1168 = vadd.f32 %v1162, %v1166
          %s1169 = sld [smem:[#allocation4 + $0x2f]]
          %v1170 = vstv %s1169
          %v1171 = vmul.f32 %v1170, %v382
          %v1172 = vmul.f32 %v1170, %v385
          %v1173 = vadd.f32 %v1167, %v1171
          %v1174 = vadd.f32 %v1168, %v1172
          %s1175 = sld [smem:[#allocation4 + $0x60]]
          %v1176 = vstv %s1175
          %v1177 = vmul.f32 %v1176, %v439
          %v1178 = vmul.f32 %v1176, %v442
          %v1179 = vadd.f32 %v1173, %v1177
          %v1180 = vadd.f32 %v1174, %v1178
          %1183 = vrot.lane.b32.xlu0 %v1179, 126
          %v1184 = vpop.permute.xlu0 %1183
          %1185 = vrot.lane.b32.xlu0 %v1180, 126
          %v1186 = vpop.permute.xlu0 %1185
          %vm1187 = vcmask 1031168
          %v1188 = vsel %vm1187, %v1184, %v1186
          %v1191 = vsel %vm1187, %v1186, 0.0
          %s1192 = scalar_lea.vmem [#allocation8], 5
          %v1193 = vld [vmem:[%s1192] ss:$8 sm:$0x3]
          %v1195 = vlaneseq
          %v1196 = vshrl.u32 %v1195, 7
          %v1197 = vsub.s32 0, %v1196
          %v1198 = vrot.slane %v1193, %v1197
          %v1199 = vlaneseq
          %v1200 = vshrl.u32 %v1199, 7
          %v1201 = vsub.s32 1, %v1200
          %v1202 = vrot.slane %v1193, %v1201
          %v1205 = vmul.f32 %v1188, %v1198
          %v1206 = vmul.f32 %v1191, %v1202
          %v1207 = vadd.f32 %v1075, %v1205
          %v1208 = vadd.f32 %v1076, %v1206
          %s1209 = sld [smem:[#allocation4 + $0x6]]
          %v1210 = vstv %s1209
          %v1211 = vmul.f32 %v1210, %v340
          %v1212 = vmul.f32 %v1210, %v337
          %v1213 = vadd.f32 %v1211, 0.0
          %v1214 = vadd.f32 %v1212, 0.0
          %s1215 = sld [smem:[#allocation4 + $0x37]]
          %v1216 = vstv %s1215
          %v1217 = vmul.f32 %v1216, %v402
          %v1218 = vmul.f32 %v1216, %v399
          %v1219 = vadd.f32 %v1213, %v1217
          %v1220 = vadd.f32 %v1214, %v1218
          %s1221 = sld [smem:[#allocation4 + $0xd]]
          %v1222 = vstv %s1221
          %v1223 = vmul.f32 %v1222, %v349
          %v1224 = vmul.f32 %v1222, %v346
          %v1225 = vadd.f32 %v1219, %v1223
          %v1226 = vadd.f32 %v1220, %v1224
          %s1227 = sld [smem:[#allocation4 + $0x3e]]
          %v1228 = vstv %s1227
          %v1229 = vmul.f32 %v1228, %v410
          %v1230 = vmul.f32 %v1228, %v407
          %v1231 = vadd.f32 %v1225, %v1229
          %v1232 = vadd.f32 %v1226, %v1230
          %s1233 = sld [smem:[#allocation4 + $0x14]]
          %v1234 = vstv %s1233
          %v1235 = vmul.f32 %v1234, %v358
          %v1236 = vmul.f32 %v1234, %v355
          %v1237 = vadd.f32 %v1231, %v1235
          %v1238 = vadd.f32 %v1232, %v1236
          %s1239 = sld [smem:[#allocation4 + $0x45]]
          %v1240 = vstv %s1239
          %v1241 = vmul.f32 %v1240, %v418
          %v1242 = vmul.f32 %v1240, %v415
          %v1243 = vadd.f32 %v1237, %v1241
          %v1244 = vadd.f32 %v1238, %v1242
          %s1245 = sld [smem:[#allocation4 + $0x1b]]
          %v1246 = vstv %s1245
          %v1247 = vmul.f32 %v1246, %v320
          %v1249 = vlaneseq
          %v1250 = vshrl.u32 %v1249, 7
          %v1251 = vsub.s32 0, %v1250
          %v1252 = vrot.slane %v1247, %v1251
          %v1253 = vlaneseq
          %v1254 = vshrl.u32 %v1253, 7
          %v1255 = vsub.s32 1, %v1254
          %v1256 = vrot.slane %v1247, %v1255
          %v1259 = vadd.f32 %v1243, %v1252
          %v1260 = vadd.f32 %v1244, %v1256
          %s1261 = sld [smem:[#allocation4 + $0x4c]]
          %v1262 = vstv %s1261
          %v1263 = vmul.f32 %v1262, %v322
          %v1265 = vlaneseq
          %v1266 = vshrl.u32 %v1265, 7
          %v1267 = vsub.s32 0, %v1266
          %v1268 = vrot.slane %v1263, %v1267
          %v1269 = vlaneseq
          %v1270 = vshrl.u32 %v1269, 7
          %v1271 = vsub.s32 1, %v1270
          %v1272 = vrot.slane %v1263, %v1271
          %v1275 = vadd.f32 %v1259, %v1268
          %v1276 = vadd.f32 %v1260, %v1272
          %s1277 = sld [smem:[#allocation4 + $0x22]]
          %v1278 = vstv %s1277
          %v1279 = vmul.f32 %v1278, %v364
          %v1280 = vmul.f32 %v1278, %v367
          %v1281 = vadd.f32 %v1275, %v1279
          %v1282 = vadd.f32 %v1276, %v1280
          %s1283 = sld [smem:[#allocation4 + $0x53]]
          %v1284 = vstv %s1283
          %v1285 = vmul.f32 %v1284, %v423
          %v1286 = vmul.f32 %v1284, %v426
          %v1287 = vadd.f32 %v1281, %v1285
          %v1288 = vadd.f32 %v1282, %v1286
          %s1289 = sld [smem:[#allocation4 + $0x29]]
          %v1290 = vstv %s1289
          %v1291 = vmul.f32 %v1290, %v373
          %v1292 = vmul.f32 %v1290, %v376
          %v1293 = vadd.f32 %v1287, %v1291
          %v1294 = vadd.f32 %v1288, %v1292
          %s1295 = sld [smem:[#allocation4 + $0x5a]]
          %v1296 = vstv %s1295
          %v1297 = vmul.f32 %v1296, %v431
          %v1298 = vmul.f32 %v1296, %v434
          %v1299 = vadd.f32 %v1293, %v1297
          %v1300 = vadd.f32 %v1294, %v1298
          %s1301 = sld [smem:[#allocation4 + $0x30]]
          %v1302 = vstv %s1301
          %v1303 = vmul.f32 %v1302, %v382
          %v1304 = vmul.f32 %v1302, %v385
          %v1305 = vadd.f32 %v1299, %v1303
          %v1306 = vadd.f32 %v1300, %v1304
          %s1307 = sld [smem:[#allocation4 + $0x61]]
          %v1308 = vstv %s1307
          %v1309 = vmul.f32 %v1308, %v439
          %v1310 = vmul.f32 %v1308, %v442
          %v1311 = vadd.f32 %v1305, %v1309
          %v1312 = vadd.f32 %v1306, %v1310
          %1315 = vrot.lane.b32.xlu0 %v1311, 125
          %v1316 = vpop.permute.xlu0 %1315
          %1317 = vrot.lane.b32.xlu0 %v1312, 125
          %v1318 = vpop.permute.xlu0 %1317
          %vm1319 = vcmask 1022976
          %v1320 = vsel %vm1319, %v1316, %v1318
          %v1323 = vsel %vm1319, %v1318, 0.0
          %s1324 = scalar_lea.vmem [#allocation8], 6
          %v1325 = vld [vmem:[%s1324] ss:$8 sm:$0x3]
          %v1327 = vlaneseq
          %v1328 = vshrl.u32 %v1327, 7
          %v1329 = vsub.s32 0, %v1328
          %v1330 = vrot.slane %v1325, %v1329
          %v1331 = vlaneseq
          %v1332 = vshrl.u32 %v1331, 7
          %v1333 = vsub.s32 1, %v1332
          %v1334 = vrot.slane %v1325, %v1333
          %v1337 = vmul.f32 %v1320, %v1330
          %v1338 = vmul.f32 %v1323, %v1334
          %v1339 = vadd.f32 %v1207, %v1337
          %v1340 = vadd.f32 %v1208, %v1338
          %v1341 = vstv %s443
          %v1342 = vadd.f32 %v1339, %v1341
          %v1343 = vadd.f32 %v1340, %v1341
          %v1344 = vxor.u32 %v1342, 2147483648
          %v1345 = vxor.u32 %v1343, 2147483648
          %v1346 = vmul.f32 %v1344, 1.442695
          %v1347 = vpow.pop %v1346
          %v1348 = vmul.f32 %v1345, 1.442695
          %v1349 = vpow.pop %v1348
          %v1350 = vadd.f32 %v1347, 1.0
          %v1351 = vadd.f32 %v1349, 1.0
          %v1352 = vrcp.pop %v1350
          %v1353 = vmul.f32 1.0, %v1352
          %v1354 = vrcp.pop %v1351
          %v1355 = vmul.f32 1.0, %v1354
          %v1358 = vcombine.low %v1353, %v1355
          %v1360 = vunpack.c.l.s4 1966171168
          %v1361 = vunpack.c.0.s8 %v1360
          %v1362 = vlaneseq
          %v1363 = vshrl.u32 %v1362, 7
          %v1364 = vsub.s32 %v1361, %v1363
          %v1365 = vrot.slane %v1358, %v1364
          %v1367 = vunpack.c.l.s4 1966171168
          %v1368 = vunpack.c.0.s8 %v1367
          %v1369 = vlaneseq
          %v1370 = vshrl.u32 %v1369, 7
          %v1371 = vsub.s32 %v1368, %v1370
          %v1372 = vrot.slane %v1365, %v1371
          %1374 = vst.msk [vmem:[%s227] sm:$0x3] %vm314, %v1372
        $region52: #{tpu_custom_call.1} parent=31 // pred_fallthru
          _
        %s1375 = sand.u32 %s112, 1
        %s1376 = scalar_lea.sflag [#allocation6], %s1375
        %s1377 = sand.u32 %s112, 1
        %s1378 = smul.addr %s1377, 2
        %s1379 = scalar_lea.vmem [#allocation11], %s1378
        // Predicated region
        $region53: #{tpu_custom_call.1} parent=31 // pred_check
          %p1380 = pneg %p122
        $region54: #{tpu_custom_call.1} parent=31 // pred_check_branch
          %1382 = sbr.rel (%p1380) target = $region56
        $region55: #{tpu_custom_call.1} parent=31 // pred_region
          %s1384 = ssub.s32 32, 32
          %1385 = vsyncadd %s1376, %s1384
          %s1386 = smul.addr %s26, 2
          %s1387 = smul.addr %s1386, 16
          %s1388 = scalar_lea.hbm %s3, %s1387
          %s1390 = sshll.u32 %s1379, 4
          %s1391 = int_to_ptr.vmem [resolvable:$true] %s1390
          %1393 = dma.vmem_to_hbm [thread:$0]  %s1391, 32, %s1388, %s1376
        $region56: #{tpu_custom_call.1} parent=31 // pred_fallthru
          _
      $region32: #{tpu_custom_call.1} parent=5 // pred_fallthru
        _
      %p1394 = scmp.le.s32.totalorder 2, %s17
      // Predicated region
      $region57: #{tpu_custom_call.1} parent=5 // pred_check
        %p1395 = pneg %p1394
      $region58: #{tpu_custom_call.1} parent=5 // pred_check_branch
        %1397 = sbr.rel (%p1395) target = $region60
      $region59: #{tpu_custom_call.1} parent=5 // pred_region
        %s1398 = ssub.s32 %s17, 2
        // Predicated region
        $region61: #{tpu_custom_call.1} parent=59 // pred_check
          %p1399 = pneg %p128
        $region62: #{tpu_custom_call.1} parent=59 // pred_check_branch
          %1401 = sbr.rel (%p1399) target = $region64
        $region63: #{tpu_custom_call.1} parent=59 // pred_region
          %s1402 = sand.u32 %s113, 1
          %s1403 = scalar_lea.sflag [#allocation6], %s1402
          %s1404 = sand.u32 %s113, 1
          %s1405 = smul.addr %s1404, 2
          %s1406 = scalar_lea.vmem [#allocation11], %s1405
          %1407 = dma.done %s1403, 32
        $region64: #{tpu_custom_call.1} parent=59 // pred_fallthru
          _
      $region60: #{tpu_custom_call.1} parent=5 // pred_fallthru
        _
    $region6: #{tpu_custom_call.1} parent=1 // loop_footer
      %s21 = sadd.s32 1, %s17
    $region7: #{tpu_custom_call.1} parent=1 // loop_footer_branch
      %16 = sbr.rel target = $region3
    $region8: #{tpu_custom_call.1} parent=1 // loop_exit
      _
    %1408 = vsyncpa [#allocation5], 1
    %s1409 = scalar_lea.sflag [#allocation5], 1
    %1410 = vsyncpa %s1409, 1
    %1411 = vsyncpa [#allocation10], 1
    %s1412 = scalar_lea.sflag [#allocation10], 1
    %1413 = vsyncpa %s1412, 1
    %1414 = vsyncpa [#allocation6], 1
    %s1415 = scalar_lea.sflag [#allocation6], 1
    %1416 = vsyncpa %s1415, 1
    %1417 = vsyncpa [#allocation7], 1
    %s1418 = scalar_lea.sflag [#allocation7], 1
    %1419 = vsyncpa %s1418, 1

</llo_original>
